<compile_context>
chip_gen: v5e
topology: v5e:2x2
jax: 0.10.0
libtpu: 0.0.40
codegen_flags: <defaults>
</compile_context>

<pallas_src>
import functools

import jax
import jax.numpy as jnp
from jax.experimental import pallas as pl
from jax.experimental.pallas import tpu as pltpu


def _round_up(n: int, m: int) -> int:
    return ((n + m - 1) // m) * m


def _chip_config():
    """Per-generation tuning knobs (tile size, elementwise dtype, VMEM capacity, v7x flag)."""
    kind = ""
    try:
        kind = jax.devices()[0].device_kind.lower()
    except Exception:
        pass
    is_v5e = ("v5e" in kind) or ("v5 lite" in kind) or ("v5litepod" in kind)
    is_v7 = "v7" in kind
    try:
        vmem_cap = int(pltpu.get_tpu_info().vmem_capacity_bytes)
    except Exception:
        vmem_cap = (64 << 20) if is_v7 else (128 << 20)
    return {
        "tile_m": 128 if is_v5e else 256,                      # v6e/v7x: fill 256x256 MXU
        "ew_dtype": jnp.float32 if is_v5e else jnp.bfloat16,   # v5e has no bf16 VPU
        "is_v7": is_v7,
        "vmem_cap": vmem_cap,
    }


def _fused_mlp_kernel(x_ref, w0_ref, wmid_ref, wlast_ref, bhid_ref, blast_ref, o_ref,
                      *, num_mid: int, neg_slope: float, ew_dtype):
    """One batch tile through all layers.

    x_ref:(TM,Kp) bf16, w0_ref:(Kp,D) bf16, wmid_ref:(Lm,D,D) bf16, wlast_ref:(D,Cp) bf16,
    bhid_ref:(L-1,1,D) f32, blast_ref:(1,Cp) f32, o_ref:(TM,Cp) f32.
    """
    compute_dtype = w0_ref.dtype  # bf16: what the MXU consumes

    def bias_act(y_acc, b):
        # f32 MXU accumulator -> bias-add + LeakyReLU in ew_dtype (bf16 on v6e/v7x, f32 on v5e)
        y = y_acc.astype(ew_dtype) + b.astype(ew_dtype)
        y = jnp.where(y > 0, y, y * jnp.asarray(neg_slope, ew_dtype))
        return y.astype(compute_dtype)

    # Layer 0: (TM,Kp) x (Kp,D), Kp padded only to 128 (not D) -> no wasted FLOPs/DMA.
    h = x_ref[...]
    y = jnp.dot(h, w0_ref[...], preferred_element_type=jnp.float32)
    h = bias_act(y, bhid_ref[0])

    # Middle layers (unrolled): (TM,D) x (D,D), weights VMEM-resident.
    for l in range(num_mid):
        y = jnp.dot(h, wmid_ref[l], preferred_element_type=jnp.float32)
        h = bias_act(y, bhid_ref[l + 1])

    # Last layer: only one 128-wide lane tile of output (no D-wide writeback).
    y = jnp.dot(h, wlast_ref[...], preferred_element_type=jnp.float32)
    o_ref[...] = (y + blast_ref[...]).astype(o_ref.dtype)


def old_predictor_forward(x, w0, w_mid, w_last, b_hid, b_last, *, num_classes: int,
                          tile_m: int | None = None, neg_slope: float = 0.01,
                          conservative: bool = False):
    """x:(B,K) f32 -> (B,num_classes) f32. Weights pre-packed/padded by init_old_predictor_params."""
    B, K = x.shape
    Kp, D = w0.shape
    Dl, Cp = w_last.shape
    num_mid = b_hid.shape[0] - 1
    assert K <= Kp and D == Dl and num_classes <= Cp
    assert w_mid.shape[1:] == (D, D) and b_hid.shape[1:] == (1, D) and b_last.shape == (1, Cp)

    cfg = _chip_config()
    ew_dtype = jnp.float32 if conservative and cfg["ew_dtype"] is jnp.float32 else cfg["ew_dtype"]

    if tile_m is None:
        tile_m = cfg["tile_m"]
    tm = max(8, min(_round_up(tile_m, 8), _round_up(B, 8)))     # batch tile, multiple of 8
    B_pad = _round_up(B, tm)

    # Stream x as bf16, padded only to K_pad columns (not the full hidden width).
    x_pad = jnp.pad(x.astype(jnp.bfloat16), ((0, B_pad - B), (0, Kp - K)))

    kernel = functools.partial(_fused_mlp_kernel, num_mid=num_mid,
                               neg_slope=neg_slope, ew_dtype=ew_dtype)

    # ---- VMEM budget: single-buffered residents + double-buffered streamed tiles + headroom.
    resident_bytes = sum(int(a.size) * a.dtype.itemsize
                         for a in (w0, w_mid, w_last, b_hid, b_last))
    stream_bytes = 2 * (tm * Kp * 2 + tm * Cp * 4)   # double-buffered bf16 in / f32 out tiles
    scratch_bytes = 2 * tm * D * 4                   # live inter-layer activations
    vmem_limit = 2 * resident_bytes + stream_bytes + scratch_bytes + (8 << 20)
    vmem_limit = int(min(max(vmem_limit, 32 << 20), int(0.9 * cfg["vmem_cap"])))

    # ---- BlockSpecs
    use_single_buffer = (not conservative) and hasattr(pl, "Buffered")

    def const_spec(block_shape):
        ndim = len(block_shape)
        idx = lambda i, _n=ndim: (0,) * _n               # constant block index -> VMEM resident
        if use_single_buffer:
            return pl.BlockSpec(block_shape, idx, pipeline_mode=pl.Buffered(1))
        return pl.BlockSpec(block_shape, idx)

    if (not conservative) and cfg["is_v7"] and hasattr(pltpu, "CORE_PARALLEL"):
        dim_sem = (pltpu.CORE_PARALLEL,)                 # real dual-TC sharding on v7x
    else:
        dim_sem = ("parallel",)

    out = pl.pallas_call(
        kernel,
        out_shape=jax.ShapeDtypeStruct((B_pad, Cp), jnp.float32),
        grid_spec=pltpu.PrefetchScalarGridSpec(
            num_scalar_prefetch=0,
            grid=(B_pad // tm,),
            in_specs=[
                pl.BlockSpec((tm, Kp), lambda i: (i, 0)),          # streamed bf16 input tile
                const_spec((Kp, D)),                               # layer-0 weight (resident)
                const_spec((w_mid.shape[0], D, D)),                # middle weights (resident)
                const_spec((D, Cp)),                               # last-layer weight (resident)
                const_spec((b_hid.shape[0], 1, D)),                # hidden biases (resident)
                const_spec((1, Cp)),                               # last bias (resident)
            ],
            out_specs=pl.BlockSpec((tm, Cp), lambda i: (i, 0)),    # lane-dense 128-wide output
        ),
        compiler_params=pltpu.CompilerParams(
            dimension_semantics=dim_sem,
            vmem_limit_bytes=vmem_limit,
        ),
    )(x_pad, w0, w_mid, w_last, b_hid, b_last)
    return out[:B, :num_classes]


def init_old_predictor_params(key, input_size, num_classes, hidden_dim, num_layers,
                              weight_dtype=jnp.bfloat16):
    """Xavier-uniform weights, bias=0.01 (mirrors nn.Linear init in the PyTorch module),
    packed & zero-padded to lane-dense widths: w0:(K_pad,D), w_mid:(L-2,D,D), w_last:(D,C_pad)."""
    assert num_layers >= 2
    Kp = _round_up(max(input_size, 128), 128)
    D = _round_up(max(hidden_dim, 128), 128)
    Cp = _round_up(max(num_classes, 128), 128)
    L_mid = num_layers - 2

    def xavier(k, fan_in, fan_out):
        limit = (6.0 / (fan_in + fan_out)) ** 0.5
        return jax.random.uniform(k, (fan_in, fan_out), jnp.float32, -limit, limit)

    keys = jax.random.split(key, num_layers)

    w0 = jnp.zeros((Kp, D), jnp.float32).at[:input_size, :hidden_dim].set(
        xavier(keys[0], input_size, hidden_dim))
    w_mid = jnp.zeros((max(L_mid, 1), D, D), jnp.float32)
    for l in range(L_mid):
        w_mid = w_mid.at[l, :hidden_dim, :hidden_dim].set(
            xavier(keys[1 + l], hidden_dim, hidden_dim))
    w_last = jnp.zeros((D, Cp), jnp.float32).at[:hidden_dim, :num_classes].set(
        xavier(keys[-1], hidden_dim, num_classes))

    b_hid = jnp.zeros((num_layers - 1, 1, D), jnp.float32).at[:, 0, :hidden_dim].set(0.01)
    b_last = jnp.zeros((1, Cp), jnp.float32).at[0, :num_classes].set(0.01)

    return (w0.astype(weight_dtype), w_mid.astype(weight_dtype), w_last.astype(weight_dtype),
            b_hid, b_last)


def old_predictor_reference(x, params, *, num_classes, neg_slope=0.01, ew_dtype=jnp.float32):
    """Pure-JAX reference using the same packed weights and dtype policy as the kernel."""
    w0, w_mid, w_last, b_hid, b_last = params
    Kp = w0.shape[0]
    num_mid = b_hid.shape[0] - 1
    compute_dtype = w0.dtype

    def bias_act(y, b):
        y = y.astype(ew_dtype) + b.astype(ew_dtype)
        y = jnp.where(y > 0, y, y * jnp.asarray(neg_slope, ew_dtype))
        return y.astype(compute_dtype)

    h = jnp.pad(x.astype(jnp.bfloat16), ((0, 0), (0, Kp - x.shape[1])))
    y = jnp.dot(h, w0, preferred_element_type=jnp.float32)
    h = bias_act(y, b_hid[0])
    for l in range(num_mid):
        y = jnp.dot(h, w_mid[l], preferred_element_type=jnp.float32)
        h = bias_act(y, b_hid[l + 1])
    y = jnp.dot(h, w_last, preferred_element_type=jnp.float32) + b_last
    return y[:, :num_classes]


if __name__ == "__main__":
    # Small shapes consistent with oldPredictor(input_size=28*2*2, num_classes=2,
    # hidden_dim=512, num_layers=10) -- hidden/depth scaled down for a quick run.
    batch = 32
    input_size = 28 * 2 * 2   # 112 (padded to K_pad=128)
    num_classes = 2           # one 128-lane output tile internally, sliced back out
    hidden_dim = 128
    num_layers = 4

    key = jax.random.PRNGKey(0)
    key_x, key_p = jax.random.split(key)
    x = jax.random.normal(key_x, (batch, input_size), jnp.float32)
    params = init_old_predictor_params(key_p, input_size, num_classes, hidden_dim, num_layers)

    fwd = jax.jit(functools.partial(old_predictor_forward,
                                    num_classes=num_classes, tile_m=16))
    try:
        out = jax.block_until_ready(fwd(x, *params))
    except Exception:
        # Conservative rebuild (no single-buffer hint / core_parallel) if newer knobs fail.
        fwd = jax.jit(functools.partial(old_predictor_forward, num_classes=num_classes,
                                        tile_m=16, conservative=True))
        out = jax.block_until_ready(fwd(x, *params))

    cfg = _chip_config()
    ref = old_predictor_reference(x, params, num_classes=num_classes, ew_dtype=cfg["ew_dtype"])

    assert out.shape == (batch, num_classes), out.shape
    assert jnp.allclose(out, ref, atol=2e-2, rtol=2e-2), "Pallas output mismatch vs reference"

    print("KERNEL_OK")
</pallas_src>

<mosaic_0001>
module attributes {stable_mosaic.version = 11 : i64} {
  func.func @_fused_mlp_kernel(%arg0: i32, %arg1: memref<16x128xbf16, #tpu.memory_space<vmem>>, %arg2: memref<128x128xbf16, #tpu.memory_space<vmem>>, %arg3: memref<2x128x128xbf16, #tpu.memory_space<vmem>>, %arg4: memref<128x128xbf16, #tpu.memory_space<vmem>>, %arg5: memref<3x1x128xf32, #tpu.memory_space<vmem>>, %arg6: memref<1x128xf32, #tpu.memory_space<vmem>>, %arg7: memref<16x128xf32, #tpu.memory_space<vmem>>) attributes {dimension_semantics = [#tpu.dimension_semantics<parallel>], iteration_bounds = array<i64: 2>, scalar_prefetch = 0 : i64, scratch_operands = 0 : i64, tpu.core_type = #tpu.core_type<tc>, window_params = [{transform_indices = @transform_0, window_bounds = array<i64: 16, 128>}, {pipeline_mode = #tpu.pipeline_mode<synchronous>, transform_indices = @transform_1, window_bounds = array<i64: 128, 128>}, {pipeline_mode = #tpu.pipeline_mode<synchronous>, transform_indices = @transform_2, window_bounds = array<i64: 2, 128, 128>}, {pipeline_mode = #tpu.pipeline_mode<synchronous>, transform_indices = @transform_3, window_bounds = array<i64: 128, 128>}, {pipeline_mode = #tpu.pipeline_mode<synchronous>, transform_indices = @transform_4, window_bounds = array<i64: 3, 1, 128>}, {pipeline_mode = #tpu.pipeline_mode<synchronous>, transform_indices = @transform_5, window_bounds = array<i64: 1, 128>}, {transform_indices = @transform_6, window_bounds = array<i64: 16, 128>}]} {
    %c0 = arith.constant 0 : index
    %c0_0 = arith.constant 0 : index
    %0 = vector.load %arg1[%c0, %c0_0] : memref<16x128xbf16, #tpu.memory_space<vmem>>, vector<16x128xbf16>
    %c0_1 = arith.constant 0 : index
    %c0_2 = arith.constant 0 : index
    %1 = vector.load %arg2[%c0_1, %c0_2] : memref<128x128xbf16, #tpu.memory_space<vmem>>, vector<128x128xbf16>
    %cst = arith.constant dense<0.000000e+00> : vector<16x128xf32>
    %2 = tpu.matmul %0, %1, %cst {dimension_numbers = #tpu.dot_dimension_numbers<[1], [0], [0], [1], [0, 0, 1, 1], [], []>} : vector<16x128xbf16>, vector<128x128xbf16>, vector<16x128xf32> -> vector<16x128xf32>
    %c0_3 = arith.constant 0 : index
    %c0_4 = arith.constant 0 : index
    %c0_5 = arith.constant 0 : index
    %3 = vector.load %arg5[%c0_3, %c0_4, %c0_5] : memref<3x1x128xf32, #tpu.memory_space<vmem>>, vector<1x1x128xf32>
    %4 = vector.shape_cast %3 : vector<1x1x128xf32> to vector<1x128xf32>
    %5 = arith.truncf %2 : vector<16x128xf32> to vector<16x128xbf16>
    %6 = arith.truncf %4 : vector<1x128xf32> to vector<1x128xbf16>
    %7 = vector.broadcast %6 : vector<1x128xbf16> to vector<16x128xbf16>
    %8 = arith.addf %5, %7 : vector<16x128xbf16>
    %cst_6 = arith.constant 0.000000e+00 : bf16
    %9 = vector.broadcast %cst_6 : bf16 to vector<16x128xbf16>
    %10 = arith.cmpf ogt, %8, %9 : vector<16x128xbf16>
    %cst_7 = arith.constant 1.000980e-02 : bf16
    %11 = vector.broadcast %cst_7 : bf16 to vector<16x128xbf16>
    %12 = arith.mulf %8, %11 : vector<16x128xbf16>
    %13 = arith.select %10, %8, %12 : vector<16x128xi1>, vector<16x128xbf16>
    %c0_8 = arith.constant 0 : index
    %c0_9 = arith.constant 0 : index
    %c0_10 = arith.constant 0 : index
    %14 = vector.load %arg3[%c0_8, %c0_9, %c0_10] : memref<2x128x128xbf16, #tpu.memory_space<vmem>>, vector<1x128x128xbf16>
    %15 = vector.shape_cast %14 : vector<1x128x128xbf16> to vector<128x128xbf16>
    %cst_11 = arith.constant dense<0.000000e+00> : vector<16x128xf32>
    %16 = tpu.matmul %13, %15, %cst_11 {dimension_numbers = #tpu.dot_dimension_numbers<[1], [0], [0], [1], [0, 0, 1, 1], [], []>} : vector<16x128xbf16>, vector<128x128xbf16>, vector<16x128xf32> -> vector<16x128xf32>
    %c1 = arith.constant 1 : index
    %c0_12 = arith.constant 0 : index
    %c0_13 = arith.constant 0 : index
    %17 = vector.load %arg5[%c1, %c0_12, %c0_13] : memref<3x1x128xf32, #tpu.memory_space<vmem>>, vector<1x1x128xf32>
    %18 = vector.shape_cast %17 : vector<1x1x128xf32> to vector<1x128xf32>
    %19 = arith.truncf %16 : vector<16x128xf32> to vector<16x128xbf16>
    %20 = arith.truncf %18 : vector<1x128xf32> to vector<1x128xbf16>
    %21 = vector.broadcast %20 : vector<1x128xbf16> to vector<16x128xbf16>
    %22 = arith.addf %19, %21 : vector<16x128xbf16>
    %cst_14 = arith.constant 0.000000e+00 : bf16
    %23 = vector.broadcast %cst_14 : bf16 to vector<16x128xbf16>
    %24 = arith.cmpf ogt, %22, %23 : vector<16x128xbf16>
    %cst_15 = arith.constant 1.000980e-02 : bf16
    %25 = vector.broadcast %cst_15 : bf16 to vector<16x128xbf16>
    %26 = arith.mulf %22, %25 : vector<16x128xbf16>
    %27 = arith.select %24, %22, %26 : vector<16x128xi1>, vector<16x128xbf16>
    %c1_16 = arith.constant 1 : index
    %c0_17 = arith.constant 0 : index
    %c0_18 = arith.constant 0 : index
    %28 = vector.load %arg3[%c1_16, %c0_17, %c0_18] : memref<2x128x128xbf16, #tpu.memory_space<vmem>>, vector<1x128x128xbf16>
    %29 = vector.shape_cast %28 : vector<1x128x128xbf16> to vector<128x128xbf16>
    %cst_19 = arith.constant dense<0.000000e+00> : vector<16x128xf32>
    %30 = tpu.matmul %27, %29, %cst_19 {dimension_numbers = #tpu.dot_dimension_numbers<[1], [0], [0], [1], [0, 0, 1, 1], [], []>} : vector<16x128xbf16>, vector<128x128xbf16>, vector<16x128xf32> -> vector<16x128xf32>
    %c2 = arith.constant 2 : index
    %c0_20 = arith.constant 0 : index
    %c0_21 = arith.constant 0 : index
    %31 = vector.load %arg5[%c2, %c0_20, %c0_21] : memref<3x1x128xf32, #tpu.memory_space<vmem>>, vector<1x1x128xf32>
    %32 = vector.shape_cast %31 : vector<1x1x128xf32> to vector<1x128xf32>
    %33 = arith.truncf %30 : vector<16x128xf32> to vector<16x128xbf16>
    %34 = arith.truncf %32 : vector<1x128xf32> to vector<1x128xbf16>
    %35 = vector.broadcast %34 : vector<1x128xbf16> to vector<16x128xbf16>
    %36 = arith.addf %33, %35 : vector<16x128xbf16>
    %cst_22 = arith.constant 0.000000e+00 : bf16
    %37 = vector.broadcast %cst_22 : bf16 to vector<16x128xbf16>
    %38 = arith.cmpf ogt, %36, %37 : vector<16x128xbf16>
    %cst_23 = arith.constant 1.000980e-02 : bf16
    %39 = vector.broadcast %cst_23 : bf16 to vector<16x128xbf16>
    %40 = arith.mulf %36, %39 : vector<16x128xbf16>
    %41 = arith.select %38, %36, %40 : vector<16x128xi1>, vector<16x128xbf16>
    %c0_24 = arith.constant 0 : index
    %c0_25 = arith.constant 0 : index
    %42 = vector.load %arg4[%c0_24, %c0_25] : memref<128x128xbf16, #tpu.memory_space<vmem>>, vector<128x128xbf16>
    %cst_26 = arith.constant dense<0.000000e+00> : vector<16x128xf32>
    %43 = tpu.matmul %41, %42, %cst_26 {dimension_numbers = #tpu.dot_dimension_numbers<[1], [0], [0], [1], [0, 0, 1, 1], [], []>} : vector<16x128xbf16>, vector<128x128xbf16>, vector<16x128xf32> -> vector<16x128xf32>
    %c0_27 = arith.constant 0 : index
    %c0_28 = arith.constant 0 : index
    %44 = vector.load %arg6[%c0_27, %c0_28] : memref<1x128xf32, #tpu.memory_space<vmem>>, vector<1x128xf32>
    %45 = vector.broadcast %44 : vector<1x128xf32> to vector<16x128xf32>
    %46 = arith.addf %43, %45 : vector<16x128xf32>
    %c0_29 = arith.constant 0 : index
    %c0_30 = arith.constant 0 : index
    %47 = vector.load %arg7[%c0_29, %c0_30] : memref<16x128xf32, #tpu.memory_space<vmem>>, vector<16x128xf32>
    tpu.vector_store %arg7[%c0_29, %c0_30], %46 {strides = array<i32>} : memref<16x128xf32, #tpu.memory_space<vmem>>, vector<16x128xf32>,
    return
  }
  func.func @transform_0(%arg0: i32) -> (i32, i32) {
    %c0_i32 = arith.constant 0 : i32
    %c0_i32_0 = arith.constant 0 : i32
    return %arg0, %c0_i32 : i32, i32
  }
  func.func @transform_1(%arg0: i32) -> (i32, i32) {
    %c0_i32 = arith.constant 0 : i32
    %c0_i32_0 = arith.constant 0 : i32
    %c0_i32_1 = arith.constant 0 : i32
    return %c0_i32, %c0_i32_0 : i32, i32
  }
  func.func @transform_2(%arg0: i32) -> (i32, i32, i32) {
    %c0_i32 = arith.constant 0 : i32
    %c0_i32_0 = arith.constant 0 : i32
    %c0_i32_1 = arith.constant 0 : i32
    %c0_i32_2 = arith.constant 0 : i32
    return %c0_i32, %c0_i32_0, %c0_i32_1 : i32, i32, i32
  }
  func.func @transform_3(%arg0: i32) -> (i32, i32) {
    %c0_i32 = arith.constant 0 : i32
    %c0_i32_0 = arith.constant 0 : i32
    %c0_i32_1 = arith.constant 0 : i32
    return %c0_i32, %c0_i32_0 : i32, i32
  }
  func.func @transform_4(%arg0: i32) -> (i32, i32, i32) {
    %c0_i32 = arith.constant 0 : i32
    %c0_i32_0 = arith.constant 0 : i32
    %c0_i32_1 = arith.constant 0 : i32
    %c0_i32_2 = arith.constant 0 : i32
    return %c0_i32, %c0_i32_0, %c0_i32_1 : i32, i32, i32
  }
  func.func @transform_5(%arg0: i32) -> (i32, i32) {
    %c0_i32 = arith.constant 0 : i32
    %c0_i32_0 = arith.constant 0 : i32
    %c0_i32_1 = arith.constant 0 : i32
    return %c0_i32, %c0_i32_0 : i32, i32
  }
  func.func @transform_6(%arg0: i32) -> (i32, i32) {
    %c0_i32 = arith.constant 0 : i32
    %c0_i32_0 = arith.constant 0 : i32
    return %arg0, %c0_i32 : i32, i32
  }
}

module attributes {stable_mosaic.version = 11 : i64} {
  func.func @_fused_mlp_kernel(%arg0: i32, %arg1: memref<16x128xbf16, #tpu.memory_space<vmem>>, %arg2: memref<128x128xbf16, #tpu.memory_space<vmem>>, %arg3: memref<2x128x128xbf16, #tpu.memory_space<vmem>>, %arg4: memref<128x128xbf16, #tpu.memory_space<vmem>>, %arg5: memref<3x1x128xf32, #tpu.memory_space<vmem>>, %arg6: memref<1x128xf32, #tpu.memory_space<vmem>>, %arg7: memref<16x128xf32, #tpu.memory_space<vmem>>) attributes {dimension_semantics = [#tpu.dimension_semantics<parallel>], iteration_bounds = array<i64: 2>, scalar_prefetch = 0 : i64, scratch_operands = 0 : i64, tpu.core_type = #tpu.core_type<tc>, window_params = [{transform_indices = @transform_0, window_bounds = array<i64: 16, 128>}, {pipeline_mode = #tpu.pipeline_mode<synchronous>, transform_indices = @transform_1, window_bounds = array<i64: 128, 128>}, {pipeline_mode = #tpu.pipeline_mode<synchronous>, transform_indices = @transform_2, window_bounds = array<i64: 2, 128, 128>}, {pipeline_mode = #tpu.pipeline_mode<synchronous>, transform_indices = @transform_3, window_bounds = array<i64: 128, 128>}, {pipeline_mode = #tpu.pipeline_mode<synchronous>, transform_indices = @transform_4, window_bounds = array<i64: 3, 1, 128>}, {pipeline_mode = #tpu.pipeline_mode<synchronous>, transform_indices = @transform_5, window_bounds = array<i64: 1, 128>}, {transform_indices = @transform_6, window_bounds = array<i64: 16, 128>}]} {
    %c0 = arith.constant 0 : index
    %c0_0 = arith.constant 0 : index
    %0 = vector.load %arg1[%c0, %c0_0] : memref<16x128xbf16, #tpu.memory_space<vmem>>, vector<16x128xbf16>
    %c0_1 = arith.constant 0 : index
    %c0_2 = arith.constant 0 : index
    %1 = vector.load %arg2[%c0_1, %c0_2] : memref<128x128xbf16, #tpu.memory_space<vmem>>, vector<128x128xbf16>
    %cst = arith.constant dense<0.000000e+00> : vector<16x128xf32>
    %2 = tpu.matmul %0, %1, %cst {dimension_numbers = #tpu.dot_dimension_numbers<[1], [0], [0], [1], [0, 0, 1, 1], [], []>} : vector<16x128xbf16>, vector<128x128xbf16>, vector<16x128xf32> -> vector<16x128xf32>
    %c0_3 = arith.constant 0 : index
    %c0_4 = arith.constant 0 : index
    %c0_5 = arith.constant 0 : index
    %3 = vector.load %arg5[%c0_3, %c0_4, %c0_5] : memref<3x1x128xf32, #tpu.memory_space<vmem>>, vector<1x1x128xf32>
    %4 = vector.shape_cast %3 : vector<1x1x128xf32> to vector<1x128xf32>
    %5 = arith.truncf %2 : vector<16x128xf32> to vector<16x128xbf16>
    %6 = arith.truncf %4 : vector<1x128xf32> to vector<1x128xbf16>
    %7 = vector.broadcast %6 : vector<1x128xbf16> to vector<16x128xbf16>
    %8 = arith.addf %5, %7 : vector<16x128xbf16>
    %cst_6 = arith.constant 0.000000e+00 : bf16
    %9 = vector.broadcast %cst_6 : bf16 to vector<16x128xbf16>
    %10 = arith.cmpf ogt, %8, %9 : vector<16x128xbf16>
    %cst_7 = arith.constant 1.000980e-02 : bf16
    %11 = vector.broadcast %cst_7 : bf16 to vector<16x128xbf16>
    %12 = arith.mulf %8, %11 : vector<16x128xbf16>
    %13 = arith.select %10, %8, %12 : vector<16x128xi1>, vector<16x128xbf16>
    %c0_8 = arith.constant 0 : index
    %c0_9 = arith.constant 0 : index
    %c0_10 = arith.constant 0 : index
    %14 = vector.load %arg3[%c0_8, %c0_9, %c0_10] : memref<2x128x128xbf16, #tpu.memory_space<vmem>>, vector<1x128x128xbf16>
    %15 = vector.shape_cast %14 : vector<1x128x128xbf16> to vector<128x128xbf16>
    %cst_11 = arith.constant dense<0.000000e+00> : vector<16x128xf32>
    %16 = tpu.matmul %13, %15, %cst_11 {dimension_numbers = #tpu.dot_dimension_numbers<[1], [0], [0], [1], [0, 0, 1, 1], [], []>} : vector<16x128xbf16>, vector<128x128xbf16>, vector<16x128xf32> -> vector<16x128xf32>
    %c1 = arith.constant 1 : index
    %c0_12 = arith.constant 0 : index
    %c0_13 = arith.constant 0 : index
    %17 = vector.load %arg5[%c1, %c0_12, %c0_13] : memref<3x1x128xf32, #tpu.memory_space<vmem>>, vector<1x1x128xf32>
    %18 = vector.shape_cast %17 : vector<1x1x128xf32> to vector<1x128xf32>
    %19 = arith.truncf %16 : vector<16x128xf32> to vector<16x128xbf16>
    %20 = arith.truncf %18 : vector<1x128xf32> to vector<1x128xbf16>
    %21 = vector.broadcast %20 : vector<1x128xbf16> to vector<16x128xbf16>
    %22 = arith.addf %19, %21 : vector<16x128xbf16>
    %cst_14 = arith.constant 0.000000e+00 : bf16
    %23 = vector.broadcast %cst_14 : bf16 to vector<16x128xbf16>
    %24 = arith.cmpf ogt, %22, %23 : vector<16x128xbf16>
    %cst_15 = arith.constant 1.000980e-02 : bf16
    %25 = vector.broadcast %cst_15 : bf16 to vector<16x128xbf16>
    %26 = arith.mulf %22, %25 : vector<16x128xbf16>
    %27 = arith.select %24, %22, %26 : vector<16x128xi1>, vector<16x128xbf16>
    %c1_16 = arith.constant 1 : index
    %c0_17 = arith.constant 0 : index
    %c0_18 = arith.constant 0 : index
    %28 = vector.load %arg3[%c1_16, %c0_17, %c0_18] : memref<2x128x128xbf16, #tpu.memory_space<vmem>>, vector<1x128x128xbf16>
    %29 = vector.shape_cast %28 : vector<1x128x128xbf16> to vector<128x128xbf16>
    %cst_19 = arith.constant dense<0.000000e+00> : vector<16x128xf32>
    %30 = tpu.matmul %27, %29, %cst_19 {dimension_numbers = #tpu.dot_dimension_numbers<[1], [0], [0], [1], [0, 0, 1, 1], [], []>} : vector<16x128xbf16>, vector<128x128xbf16>, vector<16x128xf32> -> vector<16x128xf32>
    %c2 = arith.constant 2 : index
    %c0_20 = arith.constant 0 : index
    %c0_21 = arith.constant 0 : index
    %31 = vector.load %arg5[%c2, %c0_20, %c0_21] : memref<3x1x128xf32, #tpu.memory_space<vmem>>, vector<1x1x128xf32>
    %32 = vector.shape_cast %31 : vector<1x1x128xf32> to vector<1x128xf32>
    %33 = arith.truncf %30 : vector<16x128xf32> to vector<16x128xbf16>
    %34 = arith.truncf %32 : vector<1x128xf32> to vector<1x128xbf16>
    %35 = vector.broadcast %34 : vector<1x128xbf16> to vector<16x128xbf16>
    %36 = arith.addf %33, %35 : vector<16x128xbf16>
    %cst_22 = arith.constant 0.000000e+00 : bf16
    %37 = vector.broadcast %cst_22 : bf16 to vector<16x128xbf16>
    %38 = arith.cmpf ogt, %36, %37 : vector<16x128xbf16>
    %cst_23 = arith.constant 1.000980e-02 : bf16
    %39 = vector.broadcast %cst_23 : bf16 to vector<16x128xbf16>
    %40 = arith.mulf %36, %39 : vector<16x128xbf16>
    %41 = arith.select %38, %36, %40 : vector<16x128xi1>, vector<16x128xbf16>
    %c0_24 = arith.constant 0 : index
    %c0_25 = arith.constant 0 : index
    %42 = vector.load %arg4[%c0_24, %c0_25] : memref<128x128xbf16, #tpu.memory_space<vmem>>, vector<128x128xbf16>
    %cst_26 = arith.constant dense<0.000000e+00> : vector<16x128xf32>
    %43 = tpu.matmul %41, %42, %cst_26 {dimension_numbers = #tpu.dot_dimension_numbers<[1], [0], [0], [1], [0, 0, 1, 1], [], []>} : vector<16x128xbf16>, vector<128x128xbf16>, vector<16x128xf32> -> vector<16x128xf32>
    %c0_27 = arith.constant 0 : index
    %c0_28 = arith.constant 0 : index
    %44 = vector.load %arg6[%c0_27, %c0_28] : memref<1x128xf32, #tpu.memory_space<vmem>>, vector<1x128xf32>
    %45 = vector.broadcast %44 : vector<1x128xf32> to vector<16x128xf32>
    %46 = arith.addf %43, %45 : vector<16x128xf32>
    %c0_29 = arith.constant 0 : index
    %c0_30 = arith.constant 0 : index
    %47 = vector.load %arg7[%c0_29, %c0_30] : memref<16x128xf32, #tpu.memory_space<vmem>>, vector<16x128xf32>
    tpu.vector_store %arg7[%c0_29, %c0_30], %46 {strides = array<i32>} : memref<16x128xf32, #tpu.memory_space<vmem>>, vector<16x128xf32>,
    return
  }
  func.func @transform_0(%arg0: i32) -> (i32, i32) {
    %c0_i32 = arith.constant 0 : i32
    %c0_i32_0 = arith.constant 0 : i32
    return %arg0, %c0_i32 : i32, i32
  }
  func.func @transform_1(%arg0: i32) -> (i32, i32) {
    %c0_i32 = arith.constant 0 : i32
    %c0_i32_0 = arith.constant 0 : i32
    %c0_i32_1 = arith.constant 0 : i32
    return %c0_i32, %c0_i32_0 : i32, i32
  }
  func.func @transform_2(%arg0: i32) -> (i32, i32, i32) {
    %c0_i32 = arith.constant 0 : i32
    %c0_i32_0 = arith.constant 0 : i32
    %c0_i32_1 = arith.constant 0 : i32
    %c0_i32_2 = arith.constant 0 : i32
    return %c0_i32, %c0_i32_0, %c0_i32_1 : i32, i32, i32
  }
  func.func @transform_3(%arg0: i32) -> (i32, i32) {
    %c0_i32 = arith.constant 0 : i32
    %c0_i32_0 = arith.constant 0 : i32
    %c0_i32_1 = arith.constant 0 : i32
    return %c0_i32, %c0_i32_0 : i32, i32
  }
  func.func @transform_4(%arg0: i32) -> (i32, i32, i32) {
    %c0_i32 = arith.constant 0 : i32
    %c0_i32_0 = arith.constant 0 : i32
    %c0_i32_1 = arith.constant 0 : i32
    %c0_i32_2 = arith.constant 0 : i32
    return %c0_i32, %c0_i32_0, %c0_i32_1 : i32, i32, i32
  }
  func.func @transform_5(%arg0: i32) -> (i32, i32) {
    %c0_i32 = arith.constant 0 : i32
    %c0_i32_0 = arith.constant 0 : i32
    %c0_i32_1 = arith.constant 0 : i32
    return %c0_i32, %c0_i32_0 : i32, i32
  }
  func.func @transform_6(%arg0: i32) -> (i32, i32) {
    %c0_i32 = arith.constant 0 : i32
    %c0_i32_0 = arith.constant 0 : i32
    return %arg0, %c0_i32 : i32, i32
  }
}

</mosaic_0001>

<llo_original>
// kernel: old_predictor_forward.1
$region0: #{old_predictor_forward.1}
  #allocation0 [shape = 'u32[]', space=smem, size = 0x4, offset = 0x4, fixed_abs, tag = 'smem constant byte address 0x4 - core index']
  #allocation1 [shape = 'u32[72,128]{1,0:T(1,128)}', space=vmem, size = 0x9000, scoped, tag = 'internal scratch']
  %s0 = inlined_call_operand.vmem [shape: bf16[32,128], index: 0, kind: input, shape index: {}]
  %s1 = inlined_call_operand.vmem [shape: bf16[128,128], index: 1, kind: input, shape index: {}]
  %s2 = inlined_call_operand.hbm [shape: bf16[2,128,128], index: 2, kind: input, shape index: {}]
  %s3 = inlined_call_operand.hbm [shape: bf16[128,128], index: 3, kind: input, shape index: {}]
  %s4 = inlined_call_operand.vmem [shape: f32[3,1,128], index: 4, kind: input, shape index: {}]
  %s5 = inlined_call_operand.vmem [shape: f32[1,128], index: 5, kind: input, shape index: {}]
  %s6 = inlined_call_operand.vmem [shape: f32[32,128], index: 6, kind: output, shape index: {}]
  %s7 = sld [smem:[#allocation0]]
  $region65: #{old_predictor_forward.1} parent=0
    _
  %s9 = ssub.s32 1, %s7
  %s10 = scalar_select 0, %s9, %s7
  $region1: #{old_predictor_forward.1} parent=0
    #allocation2 [shape = 'u8[65536]{0}', space=vmem, size = 0x10000, scoped, tag = 'input window, operand 2, single buffered']
    #allocation3 [shape = 's32[2]{0}', space=sflag, size = 0x8, scoped, tag = 'scoped memory for old_predictor_forward.1']
    #allocation4 [shape = 'u8[32768]{0}', space=vmem, size = 0x8000, scoped, tag = 'input window, operand 3, single buffered']
    #allocation5 [shape = 's32[1]{0}', space=sflag, size = 0x4, scoped, tag = 'scoped memory for old_predictor_forward.1']
    %11 = vsyncpa [#allocation3], 0
    %12 = vsyncpa [#allocation5], 0
    loop: start=0, step=1, limit=4
    $region2: #{old_predictor_forward.1} parent=1 // loop_pre_header
      _
    $region3: #{old_predictor_forward.1} parent=1 // loop_header
      %s14 = sphi 0, %s18
      %p15 = scmp.ge.s32.totalorder %s14, 4
      %s24 = sphi 0, %s26
      %s27 = sphi 0, %s24
      %s28 = sphi 0, %s27
      %s44 = sphi 0, %s28
      %s48 = sphi 0, %s48
      %s50 = sphi 0, %s48
      %s51 = sphi 0, %s50
      %s65 = sphi 0, %s51
      %s69 = sphi 0, %s69
      %s71 = sphi 0, %s69
      %s72 = sphi 0, %s71
      %s86 = sphi 0, %s72
      %s90 = sphi 0, %s90
      %s92 = sphi 0, %s90
      %s93 = sphi 0, %s92
      %s107 = sphi 0, %s93
      %s111 = sphi 0, %s111
      %s113 = sphi 0, %s111
      %s114 = sphi 0, %s113
      %s128 = sphi 0, %s114
      %s132 = sphi 0, %s132
      %s134 = sphi 0, %s132
      %s135 = sphi 0, %s134
      %s149 = sphi 0, %s135
      %s155 = sphi 0, %s157
      %s158 = sphi 0, %s155
      %s159 = sphi 0, %s158
      %s175 = sphi 0, %s159
    $region4: #{old_predictor_forward.1} parent=1 // loop_header_branch
      %17 = sbr.rel (%p15) target = $region8
    $region5: #{old_predictor_forward.1} parent=1 // loop_body
      %s19 = ssub.s32 %s14, 1
      %s20 = ssub.s32 %s14, 2
      %s21 = sadd.s32 %s14, 1
      %s22 = ssub.s32 %s14, %s21
      %p23 = scmp.eq.s32.totalorder %s22, 0
      %s25 = sadd.s32 %s24, 1
      %s26 = scalar_select %p23, %s24, %s25
      %p29 = pneg %p23
      %p30 = scmp.eq.s32.totalorder %s14, 1
      %p31 = por %p29, %p30
      %p32 = scmp.ne.s32.totalorder %s24, %s27
      %p33 = scmp.eq.s32.totalorder %s14, 0
      %p34 = por %p32, %p33
      %p35 = scmp.ne.s32.totalorder %s24, %s27
      %p36 = scmp.eq.s32.totalorder %s19, 1
      %p37 = por %p35, %p36
      %p38 = scmp.ne.s32.totalorder %s27, %s28
      %p39 = scmp.eq.s32.totalorder %s19, 0
      %p40 = por %p38, %p39
      %p41 = scmp.ne.s32.totalorder %s27, %s28
      %p42 = scmp.eq.s32.totalorder %s20, 1
      %p43 = por %p41, %p42
      %p45 = scmp.ne.s32.totalorder %s28, %s44
      %p46 = scmp.eq.s32.totalorder %s20, 0
      %p47 = por %p45, %p46
      %s49 = sadd.s32 %s48, 1
      %p52 = scmp.eq.s32.totalorder %s14, 1
      %p53 = scmp.ne.s32.totalorder %s48, %s50
      %p54 = scmp.eq.s32.totalorder %s14, 0
      %p55 = por %p53, %p54
      %p56 = scmp.ne.s32.totalorder %s48, %s50
      %p57 = scmp.eq.s32.totalorder %s19, 1
      %p58 = por %p56, %p57
      %p59 = scmp.ne.s32.totalorder %s50, %s51
      %p60 = scmp.eq.s32.totalorder %s19, 0
      %p61 = por %p59, %p60
      %p62 = scmp.ne.s32.totalorder %s50, %s51
      %p63 = scmp.eq.s32.totalorder %s20, 1
      %p64 = por %p62, %p63
      %p66 = scmp.ne.s32.totalorder %s51, %s65
      %p67 = scmp.eq.s32.totalorder %s20, 0
      %p68 = por %p66, %p67
      %s70 = sadd.s32 %s69, 1
      %p73 = scmp.eq.s32.totalorder %s14, 1
      %p74 = scmp.ne.s32.totalorder %s69, %s71
      %p75 = scmp.eq.s32.totalorder %s14, 0
      %p76 = por %p74, %p75
      %p77 = scmp.ne.s32.totalorder %s69, %s71
      %p78 = scmp.eq.s32.totalorder %s19, 1
      %p79 = por %p77, %p78
      %p80 = scmp.ne.s32.totalorder %s71, %s72
      %p81 = scmp.eq.s32.totalorder %s19, 0
      %p82 = por %p80, %p81
      %p83 = scmp.ne.s32.totalorder %s71, %s72
      %p84 = scmp.eq.s32.totalorder %s20, 1
      %p85 = por %p83, %p84
      %p87 = scmp.ne.s32.totalorder %s72, %s86
      %p88 = scmp.eq.s32.totalorder %s20, 0
      %p89 = por %p87, %p88
      %s91 = sadd.s32 %s90, 1
      %p94 = scmp.eq.s32.totalorder %s14, 1
      %p95 = scmp.ne.s32.totalorder %s90, %s92
      %p96 = scmp.eq.s32.totalorder %s14, 0
      %p97 = por %p95, %p96
      %p98 = scmp.ne.s32.totalorder %s90, %s92
      %p99 = scmp.eq.s32.totalorder %s19, 1
      %p100 = por %p98, %p99
      %p101 = scmp.ne.s32.totalorder %s92, %s93
      %p102 = scmp.eq.s32.totalorder %s19, 0
      %p103 = por %p101, %p102
      %p104 = scmp.ne.s32.totalorder %s92, %s93
      %p105 = scmp.eq.s32.totalorder %s20, 1
      %p106 = por %p104, %p105
      %p108 = scmp.ne.s32.totalorder %s93, %s107
      %p109 = scmp.eq.s32.totalorder %s20, 0
      %p110 = por %p108, %p109
      %s112 = sadd.s32 %s111, 1
      %p115 = scmp.eq.s32.totalorder %s14, 1
      %p116 = scmp.ne.s32.totalorder %s111, %s113
      %p117 = scmp.eq.s32.totalorder %s14, 0
      %p118 = por %p116, %p117
      %p119 = scmp.ne.s32.totalorder %s111, %s113
      %p120 = scmp.eq.s32.totalorder %s19, 1
      %p121 = por %p119, %p120
      %p122 = scmp.ne.s32.totalorder %s113, %s114
      %p123 = scmp.eq.s32.totalorder %s19, 0
      %p124 = por %p122, %p123
      %p125 = scmp.ne.s32.totalorder %s113, %s114
      %p126 = scmp.eq.s32.totalorder %s20, 1
      %p127 = por %p125, %p126
      %p129 = scmp.ne.s32.totalorder %s114, %s128
      %p130 = scmp.eq.s32.totalorder %s20, 0
      %p131 = por %p129, %p130
      %s133 = sadd.s32 %s132, 1
      %p136 = scmp.eq.s32.totalorder %s14, 1
      %p137 = scmp.ne.s32.totalorder %s132, %s134
      %p138 = scmp.eq.s32.totalorder %s14, 0
      %p139 = por %p137, %p138
      %p140 = scmp.ne.s32.totalorder %s132, %s134
      %p141 = scmp.eq.s32.totalorder %s19, 1
      %p142 = por %p140, %p141
      %p143 = scmp.ne.s32.totalorder %s134, %s135
      %p144 = scmp.eq.s32.totalorder %s19, 0
      %p145 = por %p143, %p144
      %p146 = scmp.ne.s32.totalorder %s134, %s135
      %p147 = scmp.eq.s32.totalorder %s20, 1
      %p148 = por %p146, %p147
      %p150 = scmp.ne.s32.totalorder %s135, %s149
      %p151 = scmp.eq.s32.totalorder %s20, 0
      %p152 = por %p150, %p151
      %s153 = ssub.s32 %s14, %s21
      %p154 = scmp.eq.s32.totalorder %s153, 0
      %s156 = sadd.s32 %s155, 1
      %s157 = scalar_select %p154, %s155, %s156
      %p160 = pneg %p154
      %p161 = scmp.eq.s32.totalorder %s14, 1
      %p162 = por %p160, %p161
      %p163 = scmp.ne.s32.totalorder %s155, %s158
      %p164 = scmp.eq.s32.totalorder %s14, 0
      %p165 = por %p163, %p164
      %p166 = scmp.ne.s32.totalorder %s155, %s158
      %p167 = scmp.eq.s32.totalorder %s19, 1
      %p168 = por %p166, %p167
      %p169 = scmp.ne.s32.totalorder %s158, %s159
      %p170 = scmp.eq.s32.totalorder %s19, 0
      %p171 = por %p169, %p170
      %p172 = scmp.ne.s32.totalorder %s158, %s159
      %p173 = scmp.eq.s32.totalorder %s20, 1
      %p174 = por %p172, %p173
      %p176 = scmp.ne.s32.totalorder %s159, %s175
      %p177 = scmp.eq.s32.totalorder %s20, 0
      %p178 = por %p176, %p177
      %p179 = scmp.le.s32.totalorder 1, %s14
      %p180 = scmp.lt.s32.totalorder %s14, 3
      %p181 = pnand %p179, %p180
      %p182 = pneg %p181
      // Predicated region
      $region9: #{old_predictor_forward.1} parent=5 // pred_check
        _
      $region10: #{old_predictor_forward.1} parent=5 // pred_check_branch
        %184 = sbr.rel (%p181) target = $region12
      $region11: #{old_predictor_forward.1} parent=5 // pred_region
        %s185 = ssub.s32 %s14, 1
        // Predicated region
        $region13: #{old_predictor_forward.1} parent=11 // pred_check
          %p186 = pneg %p61
        $region14: #{old_predictor_forward.1} parent=11 // pred_check_branch
          %188 = sbr.rel (%p186) target = $region16
        $region15: #{old_predictor_forward.1} parent=11 // pred_region
          _
        $region16: #{old_predictor_forward.1} parent=11 // pred_fallthru
          _
        // Predicated region
        $region17: #{old_predictor_forward.1} parent=11 // pred_check
          %p189 = pneg %p82
        $region18: #{old_predictor_forward.1} parent=11 // pred_check_branch
          %191 = sbr.rel (%p189) target = $region20
        $region19: #{old_predictor_forward.1} parent=11 // pred_region
          %193 = vsyncadd [#allocation3], 0
          %s194 = sshll.u32 %s2, 4
          %s195 = int_to_ptr.hbm [resolvable:$true] %s194
          %s196 = sshll.u32 [#allocation2], 4
          %s197 = int_to_ptr.vmem [resolvable:$true] %s196
          %202 = dma.hbm_to_vmem [thread:$0]  %s195, 2048, %s197, [#allocation3], 64, 64, 4
        $region20: #{old_predictor_forward.1} parent=11 // pred_fallthru
          _
        // Predicated region
        $region21: #{old_predictor_forward.1} parent=11 // pred_check
          %p203 = pneg %p103
        $region22: #{old_predictor_forward.1} parent=11 // pred_check_branch
          %205 = sbr.rel (%p203) target = $region24
        $region23: #{old_predictor_forward.1} parent=11 // pred_region
          %207 = vsyncadd [#allocation5], 0
          %s208 = sshll.u32 %s3, 4
          %s209 = int_to_ptr.hbm [resolvable:$true] %s208
          %s210 = sshll.u32 [#allocation4], 4
          %s211 = int_to_ptr.vmem [resolvable:$true] %s210
          %216 = dma.hbm_to_vmem [thread:$0]  %s209, 1024, %s211, [#allocation5], 64, 64, 4
        $region24: #{old_predictor_forward.1} parent=11 // pred_fallthru
          _
        // Predicated region
        $region25: #{old_predictor_forward.1} parent=11 // pred_check
          %p217 = pneg %p124
        $region26: #{old_predictor_forward.1} parent=11 // pred_check_branch
          %219 = sbr.rel (%p217) target = $region28
        $region27: #{old_predictor_forward.1} parent=11 // pred_region
          _
        $region28: #{old_predictor_forward.1} parent=11 // pred_fallthru
          _
        // Predicated region
        $region29: #{old_predictor_forward.1} parent=11 // pred_check
          %p220 = pneg %p145
        $region30: #{old_predictor_forward.1} parent=11 // pred_check_branch
          %222 = sbr.rel (%p220) target = $region32
        $region31: #{old_predictor_forward.1} parent=11 // pred_region
          _
        $region32: #{old_predictor_forward.1} parent=11 // pred_fallthru
          _
      $region12: #{old_predictor_forward.1} parent=5 // pred_fallthru
        _
      %p223 = scmp.lt.s32.totalorder %s14, 2
      // Predicated region
      $region33: #{old_predictor_forward.1} parent=5 // pred_check
        %p224 = pneg %p223
      $region34: #{old_predictor_forward.1} parent=5 // pred_check_branch
        %226 = sbr.rel (%p224) target = $region36
      $region35: #{old_predictor_forward.1} parent=5 // pred_region
        // Predicated region
        $region37: #{old_predictor_forward.1} parent=35 // pred_check
          %p227 = pneg %p34
        $region38: #{old_predictor_forward.1} parent=35 // pred_check_branch
          %229 = sbr.rel (%p227) target = $region40
        $region39: #{old_predictor_forward.1} parent=35 // pred_region
          %s230 = smul.u32 2, %s14
          %p231 = scmp.lt.s32.totalorder %s230, 3
          %s232 = scalar_select %p231, %s230, 3
          %s233 = smul.addr %s232, 4
          %s234 = scalar_lea.vmem %s0, %s233
          %s235 = smul.u32 2, %s14
        $region40: #{old_predictor_forward.1} parent=35 // pred_fallthru
          _
      $region36: #{old_predictor_forward.1} parent=5 // pred_fallthru
        _
      %p236 = scmp.le.s32.totalorder 1, %s14
      %p237 = scmp.lt.s32.totalorder %s14, 3
      %p238 = pnand %p236, %p237
      %p239 = pneg %p238
      // Predicated region
      $region41: #{old_predictor_forward.1} parent=5 // pred_check
        _
      $region42: #{old_predictor_forward.1} parent=5 // pred_check_branch
        %241 = sbr.rel (%p238) target = $region44
      $region43: #{old_predictor_forward.1} parent=5 // pred_region
        %s242 = ssub.s32 %s14, 1
        // Predicated region
        $region45: #{old_predictor_forward.1} parent=43 // pred_check
          %p243 = pneg %p82
        $region46: #{old_predictor_forward.1} parent=43 // pred_check_branch
          %245 = sbr.rel (%p243) target = $region48
        $region47: #{old_predictor_forward.1} parent=43 // pred_region
          %247 = dma.done [#allocation3], 2048
        $region48: #{old_predictor_forward.1} parent=43 // pred_fallthru
          _
        // Predicated region
        $region49: #{old_predictor_forward.1} parent=43 // pred_check
          %p248 = pneg %p103
        $region50: #{old_predictor_forward.1} parent=43 // pred_check_branch
          %250 = sbr.rel (%p248) target = $region52
        $region51: #{old_predictor_forward.1} parent=43 // pred_region
          %252 = dma.done [#allocation5], 1024
        $region52: #{old_predictor_forward.1} parent=43 // pred_fallthru
          _
        %s253 = smul.u32 2, %s19
        %p254 = scmp.lt.s32.totalorder %s253, 3
        %s255 = scalar_select %p254, %s253, 3
        %s256 = smul.addr %s255, 4
        %s257 = scalar_lea.vmem %s0, %s256
        %p258 = pneg %p40
        %p259 = pneg %p37
        %p260 = pneg %p61
        %p261 = pneg %p58
        %p262 = pneg %p82
        %p263 = pneg %p79
        %p264 = pneg %p103
        %p265 = pneg %p100
        %p266 = pneg %p124
        %p267 = pneg %p121
        %p268 = pneg %p145
        %p269 = pneg %p142
        %p270 = pneg %p171
        %p271 = pneg %p168
        %s272 = smul.u32 2, %s19
        %p273 = scmp.lt.s32.totalorder %s272, 3
        %s274 = scalar_select %p273, %s272, 3
        %s275 = smul.addr %s274, 8
        %s276 = scalar_lea.vmem %s6, %s275
        %s277 = smul.u32 2, %s19
        %p278 = scmp.lt.s32.totalorder %s277, 3
        %s279 = scalar_select %p278, %s277, 3
        %s280 = smul.addr %s279, 4
        %s281 = scalar_lea.vmem %s0, %s280
        %s282 = smul.u32 2, %s19
        %s283 = smul.u32 2, %s19
        %p284 = scmp.lt.s32.totalorder %s283, 3
        %s285 = scalar_select %p284, %s283, 3
        %s286 = smul.addr %s285, 8
        %s287 = scalar_lea.vmem %s6, %s286
        %s288 = smul.u32 2, %s19
        %v289 = vld [vmem:[%s281] sm:$0xf]
        %v290 = vld [vmem:[%s281 + $0x4] sm:$0xf]
        %v291 = vld [vmem:[%s1] sm:$0xf]
        %v292 = vld [vmem:[%s1 + $0x4] sm:$0xf]
        %v293 = vld [vmem:[%s1 + $0x8] sm:$0xf]
        %v294 = vld [vmem:[%s1 + $0xc] sm:$0xf]
        %v295 = vld [vmem:[%s1 + $0x10] sm:$0xf]
        %v296 = vld [vmem:[%s1 + $0x14] sm:$0xf]
        %v297 = vld [vmem:[%s1 + $0x18] sm:$0xf]
        %v298 = vld [vmem:[%s1 + $0x1c] sm:$0xf]
        %v299 = vld [vmem:[%s1 + $0x20] sm:$0xf]
        %v300 = vld [vmem:[%s1 + $0x24] sm:$0xf]
        %v301 = vld [vmem:[%s1 + $0x28] sm:$0xf]
        %v302 = vld [vmem:[%s1 + $0x2c] sm:$0xf]
        %v303 = vld [vmem:[%s1 + $0x30] sm:$0xf]
        %v304 = vld [vmem:[%s1 + $0x34] sm:$0xf]
        %v305 = vld [vmem:[%s1 + $0x38] sm:$0xf]
        %v306 = vld [vmem:[%s1 + $0x3c] sm:$0xf]
        %v309 = vunpack.c.l.b16 %v289
        %v310 = vunpack.c.l.b16 %v290
        %v311 = vpack.c.b16 %v310, %v309
        %v329 = vunpack.c.l.b16 %v291
        %v330 = vunpack.c.l.b16 %v292
        %v331 = vunpack.c.l.b16 %v293
        %v332 = vunpack.c.l.b16 %v294
        %v333 = vunpack.c.l.b16 %v295
        %v334 = vunpack.c.l.b16 %v296
        %v335 = vunpack.c.l.b16 %v297
        %v336 = vunpack.c.l.b16 %v298
        %v337 = vunpack.c.l.b16 %v299
        %v338 = vunpack.c.l.b16 %v300
        %v339 = vunpack.c.l.b16 %v301
        %v340 = vunpack.c.l.b16 %v302
        %v341 = vunpack.c.l.b16 %v303
        %v342 = vunpack.c.l.b16 %v304
        %v343 = vunpack.c.l.b16 %v305
        %v344 = vunpack.c.l.b16 %v306
        %v345 = vpack.c.b16 %v330, %v329
        %v346 = vpack.c.b16 %v332, %v331
        %v347 = vpack.c.b16 %v334, %v333
        %v348 = vpack.c.b16 %v336, %v335
        %v349 = vpack.c.b16 %v338, %v337
        %v350 = vpack.c.b16 %v340, %v339
        %v351 = vpack.c.b16 %v342, %v341
        %v352 = vpack.c.b16 %v344, %v343
        %361 = vmatpush.bf16.msra.mxu0 %v352
        %362 = vmatpush.bf16.msra.mxu0 %v351
        %363 = vmatpush.bf16.msra.mxu0 %v350
        %364 = vmatpush.bf16.msra.mxu0 %v349
        %365 = vmatpush.bf16.msra.mxu0 %v348
        %366 = vmatpush.bf16.msra.mxu0 %v347
        %367 = vmatpush.bf16.msra.mxu0 %v346
        %368 = vmatpush.bf16.msra.mxu0 %v345
        %369 = vmatmul.bf16.gmra.mxu0 %v311
        %v370 = vpop.f32.mrf.mxu0
        %v371 = vadd.f32 0.0, %v370
        %v372 = vpop.f32.mrf.mxu0
        %v373 = vadd.f32 0.0, %v372
        %374 = vdwg.mxu0
        %v375 = vld [vmem:[%s4] sm:$0x1]
        %v376 = vpack.c.bf16 %v371, %v371
        %v377 = vpack.c.bf16 %v373, %v373
        %v378 = vpack.c.bf16 %v375, %v375
        %v380 = vpack.i.b16 %v378, %v378
        %v382 = vperm.slane %v380, 0
        %v383 = vunpack.c.l.bf16 %v376
        %v384 = vunpack.c.l.bf16 %v377
        %v385 = vunpack.c.l.bf16 %v382
        %v386 = vadd.f32 %v383, %v385
        %v387 = vadd.f32 %v384, %v385
        %v388 = vpack.c.bf16 %v386, %v386
        %v389 = vpack.c.bf16 %v387, %v387
        %v390 = vunpack.c.l.bf16 %v388
        %v391 = vunpack.c.l.bf16 %v389
        %vm392 = vcmp.gt.f32.partialorder %v390, 0.0
        %vm393 = vcmp.gt.f32.partialorder %v391, 0.0
        %v394 = vmul.f32 %v390, 0.010009766
        %v395 = vmul.f32 %v391, 0.010009766
        %v396 = vpack.c.bf16 %v394, %v394
        %v397 = vpack.c.bf16 %v395, %v395
        %vm398 = vmpackc.low %vm392, %vm392
        %vm399 = vmpackc.low %vm393, %vm393
        %v400 = vsel %vm398, %v388, %v396
        %v401 = vsel %vm399, %v389, %v397
        %v402 = vld [vmem:[#allocation2] sm:$0xf]
        %v403 = vld [vmem:[#allocation2 + $0x4] sm:$0xf]
        %v404 = vld [vmem:[#allocation2 + $0x8] sm:$0xf]
        %v405 = vld [vmem:[#allocation2 + $0xc] sm:$0xf]
        %v406 = vld [vmem:[#allocation2 + $0x10] sm:$0xf]
        %v407 = vld [vmem:[#allocation2 + $0x14] sm:$0xf]
        %v408 = vld [vmem:[#allocation2 + $0x18] sm:$0xf]
        %v409 = vld [vmem:[#allocation2 + $0x1c] sm:$0xf]
        %v410 = vld [vmem:[#allocation2 + $0x20] sm:$0xf]
        %v411 = vld [vmem:[#allocation2 + $0x24] sm:$0xf]
        %v412 = vld [vmem:[#allocation2 + $0x28] sm:$0xf]
        %v413 = vld [vmem:[#allocation2 + $0x2c] sm:$0xf]
        %v414 = vld [vmem:[#allocation2 + $0x30] sm:$0xf]
        %v415 = vld [vmem:[#allocation2 + $0x34] sm:$0xf]
        %v416 = vld [vmem:[#allocation2 + $0x38] sm:$0xf]
        %v417 = vld [vmem:[#allocation2 + $0x3c] sm:$0xf]
        %v420 = vunpack.c.l.b16 %v400
        %v421 = vunpack.c.l.b16 %v401
        %v422 = vpack.c.b16 %v421, %v420
        %v440 = vunpack.c.l.b16 %v402
        %v441 = vunpack.c.l.b16 %v403
        %v442 = vunpack.c.l.b16 %v404
        %v443 = vunpack.c.l.b16 %v405
        %v444 = vunpack.c.l.b16 %v406
        %v445 = vunpack.c.l.b16 %v407
        %v446 = vunpack.c.l.b16 %v408
        %v447 = vunpack.c.l.b16 %v409
        %v448 = vunpack.c.l.b16 %v410
        %v449 = vunpack.c.l.b16 %v411
        %v450 = vunpack.c.l.b16 %v412
        %v451 = vunpack.c.l.b16 %v413
        %v452 = vunpack.c.l.b16 %v414
        %v453 = vunpack.c.l.b16 %v415
        %v454 = vunpack.c.l.b16 %v416
        %v455 = vunpack.c.l.b16 %v417
        %v456 = vpack.c.b16 %v441, %v440
        %v457 = vpack.c.b16 %v443, %v442
        %v458 = vpack.c.b16 %v445, %v444
        %v459 = vpack.c.b16 %v447, %v446
        %v460 = vpack.c.b16 %v449, %v448
        %v461 = vpack.c.b16 %v451, %v450
        %v462 = vpack.c.b16 %v453, %v452
        %v463 = vpack.c.b16 %v455, %v454
        %472 = vmatpush.bf16.msra.mxu0 %v463
        %473 = vmatpush.bf16.msra.mxu0 %v462
        %474 = vmatpush.bf16.msra.mxu0 %v461
        %475 = vmatpush.bf16.msra.mxu0 %v460
        %476 = vmatpush.bf16.msra.mxu0 %v459
        %477 = vmatpush.bf16.msra.mxu0 %v458
        %478 = vmatpush.bf16.msra.mxu0 %v457
        %479 = vmatpush.bf16.msra.mxu0 %v456
        %480 = vmatmul.bf16.gmra.mxu0 %v422
        %v481 = vpop.f32.mrf.mxu0
        %v482 = vadd.f32 0.0, %v481
        %v483 = vpop.f32.mrf.mxu0
        %v484 = vadd.f32 0.0, %v483
        %485 = vdwg.mxu0
        %s486 = scalar_lea.vmem %s4, 1
        %v487 = vld [vmem:[%s486] sm:$0x1]
        %v488 = vpack.c.bf16 %v482, %v482
        %v489 = vpack.c.bf16 %v484, %v484
        %v490 = vpack.c.bf16 %v487, %v487
        %v492 = vpack.i.b16 %v490, %v490
        %v494 = vperm.slane %v492, 0
        %v495 = vunpack.c.l.bf16 %v488
        %v496 = vunpack.c.l.bf16 %v489
        %v497 = vunpack.c.l.bf16 %v494
        %v498 = vadd.f32 %v495, %v497
        %v499 = vadd.f32 %v496, %v497
        %v500 = vpack.c.bf16 %v498, %v498
        %v501 = vpack.c.bf16 %v499, %v499
        %v502 = vunpack.c.l.bf16 %v500
        %v503 = vunpack.c.l.bf16 %v501
        %vm504 = vcmp.gt.f32.partialorder %v502, 0.0
        %vm505 = vcmp.gt.f32.partialorder %v503, 0.0
        %v506 = vmul.f32 %v502, 0.010009766
        %v507 = vmul.f32 %v503, 0.010009766
        %v508 = vpack.c.bf16 %v506, %v506
        %v509 = vpack.c.bf16 %v507, %v507
        %vm510 = vmpackc.low %vm504, %vm504
        %vm511 = vmpackc.low %vm505, %vm505
        %v512 = vsel %vm510, %v500, %v508
        %v513 = vsel %vm511, %v501, %v509
        %s514 = scalar_lea.vmem [#allocation2], 64
        %v515 = vld [vmem:[%s514] sm:$0xf]
        %v516 = vld [vmem:[%s514 + $0x4] sm:$0xf]
        %v517 = vld [vmem:[%s514 + $0x8] sm:$0xf]
        %v518 = vld [vmem:[%s514 + $0xc] sm:$0xf]
        %v519 = vld [vmem:[%s514 + $0x10] sm:$0xf]
        %v520 = vld [vmem:[%s514 + $0x14] sm:$0xf]
        %v521 = vld [vmem:[%s514 + $0x18] sm:$0xf]
        %v522 = vld [vmem:[%s514 + $0x1c] sm:$0xf]
        %v523 = vld [vmem:[%s514 + $0x20] sm:$0xf]
        %v524 = vld [vmem:[%s514 + $0x24] sm:$0xf]
        %v525 = vld [vmem:[%s514 + $0x28] sm:$0xf]
        %v526 = vld [vmem:[%s514 + $0x2c] sm:$0xf]
        %v527 = vld [vmem:[%s514 + $0x30] sm:$0xf]
        %v528 = vld [vmem:[%s514 + $0x34] sm:$0xf]
        %v529 = vld [vmem:[%s514 + $0x38] sm:$0xf]
        %v530 = vld [vmem:[%s514 + $0x3c] sm:$0xf]
        %v533 = vunpack.c.l.b16 %v512
        %v534 = vunpack.c.l.b16 %v513
        %v535 = vpack.c.b16 %v534, %v533
        %v553 = vunpack.c.l.b16 %v515
        %v554 = vunpack.c.l.b16 %v516
        %v555 = vunpack.c.l.b16 %v517
        %v556 = vunpack.c.l.b16 %v518
        %v557 = vunpack.c.l.b16 %v519
        %v558 = vunpack.c.l.b16 %v520
        %v559 = vunpack.c.l.b16 %v521
        %v560 = vunpack.c.l.b16 %v522
        %v561 = vunpack.c.l.b16 %v523
        %v562 = vunpack.c.l.b16 %v524
        %v563 = vunpack.c.l.b16 %v525
        %v564 = vunpack.c.l.b16 %v526
        %v565 = vunpack.c.l.b16 %v527
        %v566 = vunpack.c.l.b16 %v528
        %v567 = vunpack.c.l.b16 %v529
        %v568 = vunpack.c.l.b16 %v530
        %v569 = vpack.c.b16 %v554, %v553
        %v570 = vpack.c.b16 %v556, %v555
        %v571 = vpack.c.b16 %v558, %v557
        %v572 = vpack.c.b16 %v560, %v559
        %v573 = vpack.c.b16 %v562, %v561
        %v574 = vpack.c.b16 %v564, %v563
        %v575 = vpack.c.b16 %v566, %v565
        %v576 = vpack.c.b16 %v568, %v567
        %585 = vmatpush.bf16.msra.mxu0 %v576
        %586 = vmatpush.bf16.msra.mxu0 %v575
        %587 = vmatpush.bf16.msra.mxu0 %v574
        %588 = vmatpush.bf16.msra.mxu0 %v573
        %589 = vmatpush.bf16.msra.mxu0 %v572
        %590 = vmatpush.bf16.msra.mxu0 %v571
        %591 = vmatpush.bf16.msra.mxu0 %v570
        %592 = vmatpush.bf16.msra.mxu0 %v569
        %593 = vmatmul.bf16.gmra.mxu0 %v535
        %v594 = vpop.f32.mrf.mxu0
        %v595 = vadd.f32 0.0, %v594
        %v596 = vpop.f32.mrf.mxu0
        %v597 = vadd.f32 0.0, %v596
        %598 = vdwg.mxu0
        %s599 = scalar_lea.vmem %s4, 2
        %v600 = vld [vmem:[%s599] sm:$0x1]
        %v601 = vpack.c.bf16 %v595, %v595
        %v602 = vpack.c.bf16 %v597, %v597
        %v603 = vpack.c.bf16 %v600, %v600
        %v605 = vpack.i.b16 %v603, %v603
        %v607 = vperm.slane %v605, 0
        %v608 = vunpack.c.l.bf16 %v601
        %v609 = vunpack.c.l.bf16 %v602
        %v610 = vunpack.c.l.bf16 %v607
        %v611 = vadd.f32 %v608, %v610
        %v612 = vadd.f32 %v609, %v610
        %v613 = vpack.c.bf16 %v611, %v611
        %v614 = vpack.c.bf16 %v612, %v612
        %v615 = vunpack.c.l.bf16 %v613
        %v616 = vunpack.c.l.bf16 %v614
        %vm617 = vcmp.gt.f32.partialorder %v615, 0.0
        %vm618 = vcmp.gt.f32.partialorder %v616, 0.0
        %v619 = vmul.f32 %v615, 0.010009766
        %v620 = vmul.f32 %v616, 0.010009766
        %v621 = vpack.c.bf16 %v619, %v619
        %v622 = vpack.c.bf16 %v620, %v620
        %vm623 = vmpackc.low %vm617, %vm617
        %vm624 = vmpackc.low %vm618, %vm618
        %v625 = vsel %vm623, %v613, %v621
        %v626 = vsel %vm624, %v614, %v622
        %v627 = vld [vmem:[#allocation4] sm:$0xf]
        %v628 = vld [vmem:[#allocation4 + $0x4] sm:$0xf]
        %v629 = vld [vmem:[#allocation4 + $0x8] sm:$0xf]
        %v630 = vld [vmem:[#allocation4 + $0xc] sm:$0xf]
        %v631 = vld [vmem:[#allocation4 + $0x10] sm:$0xf]
        %v632 = vld [vmem:[#allocation4 + $0x14] sm:$0xf]
        %v633 = vld [vmem:[#allocation4 + $0x18] sm:$0xf]
        %v634 = vld [vmem:[#allocation4 + $0x1c] sm:$0xf]
        %v635 = vld [vmem:[#allocation4 + $0x20] sm:$0xf]
        %v636 = vld [vmem:[#allocation4 + $0x24] sm:$0xf]
        %v637 = vld [vmem:[#allocation4 + $0x28] sm:$0xf]
        %v638 = vld [vmem:[#allocation4 + $0x2c] sm:$0xf]
        %v639 = vld [vmem:[#allocation4 + $0x30] sm:$0xf]
        %v640 = vld [vmem:[#allocation4 + $0x34] sm:$0xf]
        %v641 = vld [vmem:[#allocation4 + $0x38] sm:$0xf]
        %v642 = vld [vmem:[#allocation4 + $0x3c] sm:$0xf]
        %v643 = vld [vmem:[%s5] sm:$0x1]
        %v645 = vperm.slane %v643, 0
        %v649 = vunpack.c.l.b16 %v625
        %v650 = vunpack.c.l.b16 %v626
        %v651 = vpack.c.b16 %v650, %v649
        %v669 = vunpack.c.l.b16 %v627
        %v670 = vunpack.c.l.b16 %v628
        %v671 = vunpack.c.l.b16 %v629
        %v672 = vunpack.c.l.b16 %v630
        %v673 = vunpack.c.l.b16 %v631
        %v674 = vunpack.c.l.b16 %v632
        %v675 = vunpack.c.l.b16 %v633
        %v676 = vunpack.c.l.b16 %v634
        %v677 = vunpack.c.l.b16 %v635
        %v678 = vunpack.c.l.b16 %v636
        %v679 = vunpack.c.l.b16 %v637
        %v680 = vunpack.c.l.b16 %v638
        %v681 = vunpack.c.l.b16 %v639
        %v682 = vunpack.c.l.b16 %v640
        %v683 = vunpack.c.l.b16 %v641
        %v684 = vunpack.c.l.b16 %v642
        %v685 = vpack.c.b16 %v670, %v669
        %v686 = vpack.c.b16 %v672, %v671
        %v687 = vpack.c.b16 %v674, %v673
        %v688 = vpack.c.b16 %v676, %v675
        %v689 = vpack.c.b16 %v678, %v677
        %v690 = vpack.c.b16 %v680, %v679
        %v691 = vpack.c.b16 %v682, %v681
        %v692 = vpack.c.b16 %v684, %v683
        %701 = vmatpush.bf16.msra.mxu0 %v692
        %702 = vmatpush.bf16.msra.mxu0 %v691
        %703 = vmatpush.bf16.msra.mxu0 %v690
        %704 = vmatpush.bf16.msra.mxu0 %v689
        %705 = vmatpush.bf16.msra.mxu0 %v688
        %706 = vmatpush.bf16.msra.mxu0 %v687
        %707 = vmatpush.bf16.msra.mxu0 %v686
        %708 = vmatpush.bf16.msra.mxu0 %v685
        %709 = vmatmul.bf16.gmra.mxu0 %v651
        %v710 = vpop.f32.mrf.mxu0
        %v711 = vadd.f32 %v645, %v710
        %v712 = vpop.f32.mrf.mxu0
        %v713 = vadd.f32 %v645, %v712
        %714 = vdwg.mxu0
        %715 = vst [vmem:[%s287] sm:$0xff] %v711
        %716 = vst [vmem:[%s287 + $0x8] sm:$0xff] %v713
        %s717 = smul.u32 2, %s19
        %p718 = scmp.lt.s32.totalorder %s717, 3
        %s719 = scalar_select %p718, %s717, 3
        %s720 = smul.addr %s719, 8
        %s721 = scalar_lea.vmem %s6, %s720
        // Predicated region
        $region53: #{old_predictor_forward.1} parent=43 // pred_check
          %p722 = pneg %p168
        $region54: #{old_predictor_forward.1} parent=43 // pred_check_branch
          %724 = sbr.rel (%p722) target = $region56
        $region55: #{old_predictor_forward.1} parent=43 // pred_region
          %s725 = smul.u32 2, %s19
        $region56: #{old_predictor_forward.1} parent=43 // pred_fallthru
          _
      $region44: #{old_predictor_forward.1} parent=5 // pred_fallthru
        _
      %p726 = scmp.le.s32.totalorder 2, %s14
      // Predicated region
      $region57: #{old_predictor_forward.1} parent=5 // pred_check
        %p727 = pneg %p726
      $region58: #{old_predictor_forward.1} parent=5 // pred_check_branch
        %729 = sbr.rel (%p727) target = $region60
      $region59: #{old_predictor_forward.1} parent=5 // pred_region
        %s730 = ssub.s32 %s14, 2
        // Predicated region
        $region61: #{old_predictor_forward.1} parent=59 // pred_check
          %p731 = pneg %p174
        $region62: #{old_predictor_forward.1} parent=59 // pred_check_branch
          %733 = sbr.rel (%p731) target = $region64
        $region63: #{old_predictor_forward.1} parent=59 // pred_region
          %s734 = smul.u32 2, %s20
          %p735 = scmp.lt.s32.totalorder %s734, 3
          %s736 = scalar_select %p735, %s734, 3
          %s737 = smul.addr %s736, 8
          %s738 = scalar_lea.vmem %s6, %s737
        $region64: #{old_predictor_forward.1} parent=59 // pred_fallthru
          _
      $region60: #{old_predictor_forward.1} parent=5 // pred_fallthru
        _
    $region6: #{old_predictor_forward.1} parent=1 // loop_footer
      %s18 = sadd.s32 1, %s14
    $region7: #{old_predictor_forward.1} parent=1 // loop_footer_branch
      %13 = sbr.rel target = $region3
    $region8: #{old_predictor_forward.1} parent=1 // loop_exit
      _
    %739 = vsyncpa [#allocation3], 1
    %s740 = scalar_lea.sflag [#allocation3], 1
    %741 = vsyncpa %s740, 1
    %742 = vsyncpa [#allocation5], 1

// kernel: old_predictor_forward.1
$region0: #{old_predictor_forward.1}
  #allocation0 [shape = 'u32[]', space=smem, size = 0x4, offset = 0x4, fixed_abs, tag = 'smem constant byte address 0x4 - core index']
  #allocation1 [shape = 'u32[72,128]{1,0:T(1,128)}', space=vmem, size = 0x9000, scoped, tag = 'internal scratch']
  %s0 = inlined_call_operand.vmem [shape: bf16[32,128], index: 0, kind: input, shape index: {}]
  %s1 = inlined_call_operand.vmem [shape: bf16[128,128], index: 1, kind: input, shape index: {}]
  %s2 = inlined_call_operand.hbm [shape: bf16[2,128,128], index: 2, kind: input, shape index: {}]
  %s3 = inlined_call_operand.hbm [shape: bf16[128,128], index: 3, kind: input, shape index: {}]
  %s4 = inlined_call_operand.vmem [shape: f32[3,1,128], index: 4, kind: input, shape index: {}]
  %s5 = inlined_call_operand.vmem [shape: f32[1,128], index: 5, kind: input, shape index: {}]
  %s6 = inlined_call_operand.vmem [shape: f32[32,128], index: 6, kind: output, shape index: {}]
  %s7 = sld [smem:[#allocation0]]
  $region65: #{old_predictor_forward.1} parent=0
    _
  %s9 = ssub.s32 1, %s7
  %s10 = scalar_select 0, %s9, %s7
  $region1: #{old_predictor_forward.1} parent=0
    #allocation2 [shape = 'u8[65536]{0}', space=vmem, size = 0x10000, scoped, tag = 'input window, operand 2, single buffered']
    #allocation3 [shape = 's32[2]{0}', space=sflag, size = 0x8, scoped, tag = 'scoped memory for old_predictor_forward.1']
    #allocation4 [shape = 'u8[32768]{0}', space=vmem, size = 0x8000, scoped, tag = 'input window, operand 3, single buffered']
    #allocation5 [shape = 's32[1]{0}', space=sflag, size = 0x4, scoped, tag = 'scoped memory for old_predictor_forward.1']
    %11 = vsyncpa [#allocation3], 0
    %12 = vsyncpa [#allocation5], 0
    loop: start=0, step=1, limit=4
    $region2: #{old_predictor_forward.1} parent=1 // loop_pre_header
      _
    $region3: #{old_predictor_forward.1} parent=1 // loop_header
      %s14 = sphi 0, %s18
      %p15 = scmp.ge.s32.totalorder %s14, 4
      %s24 = sphi 0, %s26
      %s27 = sphi 0, %s24
      %s28 = sphi 0, %s27
      %s44 = sphi 0, %s28
      %s48 = sphi 0, %s48
      %s50 = sphi 0, %s48
      %s51 = sphi 0, %s50
      %s65 = sphi 0, %s51
      %s69 = sphi 0, %s69
      %s71 = sphi 0, %s69
      %s72 = sphi 0, %s71
      %s86 = sphi 0, %s72
      %s90 = sphi 0, %s90
      %s92 = sphi 0, %s90
      %s93 = sphi 0, %s92
      %s107 = sphi 0, %s93
      %s111 = sphi 0, %s111
      %s113 = sphi 0, %s111
      %s114 = sphi 0, %s113
      %s128 = sphi 0, %s114
      %s132 = sphi 0, %s132
      %s134 = sphi 0, %s132
      %s135 = sphi 0, %s134
      %s149 = sphi 0, %s135
      %s155 = sphi 0, %s157
      %s158 = sphi 0, %s155
      %s159 = sphi 0, %s158
      %s175 = sphi 0, %s159
    $region4: #{old_predictor_forward.1} parent=1 // loop_header_branch
      %17 = sbr.rel (%p15) target = $region8
    $region5: #{old_predictor_forward.1} parent=1 // loop_body
      %s19 = ssub.s32 %s14, 1
      %s20 = ssub.s32 %s14, 2
      %s21 = sadd.s32 %s14, 1
      %s22 = ssub.s32 %s14, %s21
      %p23 = scmp.eq.s32.totalorder %s22, 0
      %s25 = sadd.s32 %s24, 1
      %s26 = scalar_select %p23, %s24, %s25
      %p29 = pneg %p23
      %p30 = scmp.eq.s32.totalorder %s14, 1
      %p31 = por %p29, %p30
      %p32 = scmp.ne.s32.totalorder %s24, %s27
      %p33 = scmp.eq.s32.totalorder %s14, 0
      %p34 = por %p32, %p33
      %p35 = scmp.ne.s32.totalorder %s24, %s27
      %p36 = scmp.eq.s32.totalorder %s19, 1
      %p37 = por %p35, %p36
      %p38 = scmp.ne.s32.totalorder %s27, %s28
      %p39 = scmp.eq.s32.totalorder %s19, 0
      %p40 = por %p38, %p39
      %p41 = scmp.ne.s32.totalorder %s27, %s28
      %p42 = scmp.eq.s32.totalorder %s20, 1
      %p43 = por %p41, %p42
      %p45 = scmp.ne.s32.totalorder %s28, %s44
      %p46 = scmp.eq.s32.totalorder %s20, 0
      %p47 = por %p45, %p46
      %s49 = sadd.s32 %s48, 1
      %p52 = scmp.eq.s32.totalorder %s14, 1
      %p53 = scmp.ne.s32.totalorder %s48, %s50
      %p54 = scmp.eq.s32.totalorder %s14, 0
      %p55 = por %p53, %p54
      %p56 = scmp.ne.s32.totalorder %s48, %s50
      %p57 = scmp.eq.s32.totalorder %s19, 1
      %p58 = por %p56, %p57
      %p59 = scmp.ne.s32.totalorder %s50, %s51
      %p60 = scmp.eq.s32.totalorder %s19, 0
      %p61 = por %p59, %p60
      %p62 = scmp.ne.s32.totalorder %s50, %s51
      %p63 = scmp.eq.s32.totalorder %s20, 1
      %p64 = por %p62, %p63
      %p66 = scmp.ne.s32.totalorder %s51, %s65
      %p67 = scmp.eq.s32.totalorder %s20, 0
      %p68 = por %p66, %p67
      %s70 = sadd.s32 %s69, 1
      %p73 = scmp.eq.s32.totalorder %s14, 1
      %p74 = scmp.ne.s32.totalorder %s69, %s71
      %p75 = scmp.eq.s32.totalorder %s14, 0
      %p76 = por %p74, %p75
      %p77 = scmp.ne.s32.totalorder %s69, %s71
      %p78 = scmp.eq.s32.totalorder %s19, 1
      %p79 = por %p77, %p78
      %p80 = scmp.ne.s32.totalorder %s71, %s72
      %p81 = scmp.eq.s32.totalorder %s19, 0
      %p82 = por %p80, %p81
      %p83 = scmp.ne.s32.totalorder %s71, %s72
      %p84 = scmp.eq.s32.totalorder %s20, 1
      %p85 = por %p83, %p84
      %p87 = scmp.ne.s32.totalorder %s72, %s86
      %p88 = scmp.eq.s32.totalorder %s20, 0
      %p89 = por %p87, %p88
      %s91 = sadd.s32 %s90, 1
      %p94 = scmp.eq.s32.totalorder %s14, 1
      %p95 = scmp.ne.s32.totalorder %s90, %s92
      %p96 = scmp.eq.s32.totalorder %s14, 0
      %p97 = por %p95, %p96
      %p98 = scmp.ne.s32.totalorder %s90, %s92
      %p99 = scmp.eq.s32.totalorder %s19, 1
      %p100 = por %p98, %p99
      %p101 = scmp.ne.s32.totalorder %s92, %s93
      %p102 = scmp.eq.s32.totalorder %s19, 0
      %p103 = por %p101, %p102
      %p104 = scmp.ne.s32.totalorder %s92, %s93
      %p105 = scmp.eq.s32.totalorder %s20, 1
      %p106 = por %p104, %p105
      %p108 = scmp.ne.s32.totalorder %s93, %s107
      %p109 = scmp.eq.s32.totalorder %s20, 0
      %p110 = por %p108, %p109
      %s112 = sadd.s32 %s111, 1
      %p115 = scmp.eq.s32.totalorder %s14, 1
      %p116 = scmp.ne.s32.totalorder %s111, %s113
      %p117 = scmp.eq.s32.totalorder %s14, 0
      %p118 = por %p116, %p117
      %p119 = scmp.ne.s32.totalorder %s111, %s113
      %p120 = scmp.eq.s32.totalorder %s19, 1
      %p121 = por %p119, %p120
      %p122 = scmp.ne.s32.totalorder %s113, %s114
      %p123 = scmp.eq.s32.totalorder %s19, 0
      %p124 = por %p122, %p123
      %p125 = scmp.ne.s32.totalorder %s113, %s114
      %p126 = scmp.eq.s32.totalorder %s20, 1
      %p127 = por %p125, %p126
      %p129 = scmp.ne.s32.totalorder %s114, %s128
      %p130 = scmp.eq.s32.totalorder %s20, 0
      %p131 = por %p129, %p130
      %s133 = sadd.s32 %s132, 1
      %p136 = scmp.eq.s32.totalorder %s14, 1
      %p137 = scmp.ne.s32.totalorder %s132, %s134
      %p138 = scmp.eq.s32.totalorder %s14, 0
      %p139 = por %p137, %p138
      %p140 = scmp.ne.s32.totalorder %s132, %s134
      %p141 = scmp.eq.s32.totalorder %s19, 1
      %p142 = por %p140, %p141
      %p143 = scmp.ne.s32.totalorder %s134, %s135
      %p144 = scmp.eq.s32.totalorder %s19, 0
      %p145 = por %p143, %p144
      %p146 = scmp.ne.s32.totalorder %s134, %s135
      %p147 = scmp.eq.s32.totalorder %s20, 1
      %p148 = por %p146, %p147
      %p150 = scmp.ne.s32.totalorder %s135, %s149
      %p151 = scmp.eq.s32.totalorder %s20, 0
      %p152 = por %p150, %p151
      %s153 = ssub.s32 %s14, %s21
      %p154 = scmp.eq.s32.totalorder %s153, 0
      %s156 = sadd.s32 %s155, 1
      %s157 = scalar_select %p154, %s155, %s156
      %p160 = pneg %p154
      %p161 = scmp.eq.s32.totalorder %s14, 1
      %p162 = por %p160, %p161
      %p163 = scmp.ne.s32.totalorder %s155, %s158
      %p164 = scmp.eq.s32.totalorder %s14, 0
      %p165 = por %p163, %p164
      %p166 = scmp.ne.s32.totalorder %s155, %s158
      %p167 = scmp.eq.s32.totalorder %s19, 1
      %p168 = por %p166, %p167
      %p169 = scmp.ne.s32.totalorder %s158, %s159
      %p170 = scmp.eq.s32.totalorder %s19, 0
      %p171 = por %p169, %p170
      %p172 = scmp.ne.s32.totalorder %s158, %s159
      %p173 = scmp.eq.s32.totalorder %s20, 1
      %p174 = por %p172, %p173
      %p176 = scmp.ne.s32.totalorder %s159, %s175
      %p177 = scmp.eq.s32.totalorder %s20, 0
      %p178 = por %p176, %p177
      %p179 = scmp.le.s32.totalorder 1, %s14
      %p180 = scmp.lt.s32.totalorder %s14, 3
      %p181 = pnand %p179, %p180
      %p182 = pneg %p181
      // Predicated region
      $region9: #{old_predictor_forward.1} parent=5 // pred_check
        _
      $region10: #{old_predictor_forward.1} parent=5 // pred_check_branch
        %184 = sbr.rel (%p181) target = $region12
      $region11: #{old_predictor_forward.1} parent=5 // pred_region
        %s185 = ssub.s32 %s14, 1
        // Predicated region
        $region13: #{old_predictor_forward.1} parent=11 // pred_check
          %p186 = pneg %p61
        $region14: #{old_predictor_forward.1} parent=11 // pred_check_branch
          %188 = sbr.rel (%p186) target = $region16
        $region15: #{old_predictor_forward.1} parent=11 // pred_region
          _
        $region16: #{old_predictor_forward.1} parent=11 // pred_fallthru
          _
        // Predicated region
        $region17: #{old_predictor_forward.1} parent=11 // pred_check
          %p189 = pneg %p82
        $region18: #{old_predictor_forward.1} parent=11 // pred_check_branch
          %191 = sbr.rel (%p189) target = $region20
        $region19: #{old_predictor_forward.1} parent=11 // pred_region
          %193 = vsyncadd [#allocation3], 0
          %s194 = sshll.u32 %s2, 4
          %s195 = int_to_ptr.hbm [resolvable:$true] %s194
          %s196 = sshll.u32 [#allocation2], 4
          %s197 = int_to_ptr.vmem [resolvable:$true] %s196
          %202 = dma.hbm_to_vmem [thread:$0]  %s195, 2048, %s197, [#allocation3], 64, 64, 4
        $region20: #{old_predictor_forward.1} parent=11 // pred_fallthru
          _
        // Predicated region
        $region21: #{old_predictor_forward.1} parent=11 // pred_check
          %p203 = pneg %p103
        $region22: #{old_predictor_forward.1} parent=11 // pred_check_branch
          %205 = sbr.rel (%p203) target = $region24
        $region23: #{old_predictor_forward.1} parent=11 // pred_region
          %207 = vsyncadd [#allocation5], 0
          %s208 = sshll.u32 %s3, 4
          %s209 = int_to_ptr.hbm [resolvable:$true] %s208
          %s210 = sshll.u32 [#allocation4], 4
          %s211 = int_to_ptr.vmem [resolvable:$true] %s210
          %216 = dma.hbm_to_vmem [thread:$0]  %s209, 1024, %s211, [#allocation5], 64, 64, 4
        $region24: #{old_predictor_forward.1} parent=11 // pred_fallthru
          _
        // Predicated region
        $region25: #{old_predictor_forward.1} parent=11 // pred_check
          %p217 = pneg %p124
        $region26: #{old_predictor_forward.1} parent=11 // pred_check_branch
          %219 = sbr.rel (%p217) target = $region28
        $region27: #{old_predictor_forward.1} parent=11 // pred_region
          _
        $region28: #{old_predictor_forward.1} parent=11 // pred_fallthru
          _
        // Predicated region
        $region29: #{old_predictor_forward.1} parent=11 // pred_check
          %p220 = pneg %p145
        $region30: #{old_predictor_forward.1} parent=11 // pred_check_branch
          %222 = sbr.rel (%p220) target = $region32
        $region31: #{old_predictor_forward.1} parent=11 // pred_region
          _
        $region32: #{old_predictor_forward.1} parent=11 // pred_fallthru
          _
      $region12: #{old_predictor_forward.1} parent=5 // pred_fallthru
        _
      %p223 = scmp.lt.s32.totalorder %s14, 2
      // Predicated region
      $region33: #{old_predictor_forward.1} parent=5 // pred_check
        %p224 = pneg %p223
      $region34: #{old_predictor_forward.1} parent=5 // pred_check_branch
        %226 = sbr.rel (%p224) target = $region36
      $region35: #{old_predictor_forward.1} parent=5 // pred_region
        // Predicated region
        $region37: #{old_predictor_forward.1} parent=35 // pred_check
          %p227 = pneg %p34
        $region38: #{old_predictor_forward.1} parent=35 // pred_check_branch
          %229 = sbr.rel (%p227) target = $region40
        $region39: #{old_predictor_forward.1} parent=35 // pred_region
          %s230 = smul.u32 2, %s14
          %p231 = scmp.lt.s32.totalorder %s230, 3
          %s232 = scalar_select %p231, %s230, 3
          %s233 = smul.addr %s232, 4
          %s234 = scalar_lea.vmem %s0, %s233
          %s235 = smul.u32 2, %s14
        $region40: #{old_predictor_forward.1} parent=35 // pred_fallthru
          _
      $region36: #{old_predictor_forward.1} parent=5 // pred_fallthru
        _
      %p236 = scmp.le.s32.totalorder 1, %s14
      %p237 = scmp.lt.s32.totalorder %s14, 3
      %p238 = pnand %p236, %p237
      %p239 = pneg %p238
      // Predicated region
      $region41: #{old_predictor_forward.1} parent=5 // pred_check
        _
      $region42: #{old_predictor_forward.1} parent=5 // pred_check_branch
        %241 = sbr.rel (%p238) target = $region44
      $region43: #{old_predictor_forward.1} parent=5 // pred_region
        %s242 = ssub.s32 %s14, 1
        // Predicated region
        $region45: #{old_predictor_forward.1} parent=43 // pred_check
          %p243 = pneg %p82
        $region46: #{old_predictor_forward.1} parent=43 // pred_check_branch
          %245 = sbr.rel (%p243) target = $region48
        $region47: #{old_predictor_forward.1} parent=43 // pred_region
          %247 = dma.done [#allocation3], 2048
        $region48: #{old_predictor_forward.1} parent=43 // pred_fallthru
          _
        // Predicated region
        $region49: #{old_predictor_forward.1} parent=43 // pred_check
          %p248 = pneg %p103
        $region50: #{old_predictor_forward.1} parent=43 // pred_check_branch
          %250 = sbr.rel (%p248) target = $region52
        $region51: #{old_predictor_forward.1} parent=43 // pred_region
          %252 = dma.done [#allocation5], 1024
        $region52: #{old_predictor_forward.1} parent=43 // pred_fallthru
          _
        %s253 = smul.u32 2, %s19
        %p254 = scmp.lt.s32.totalorder %s253, 3
        %s255 = scalar_select %p254, %s253, 3
        %s256 = smul.addr %s255, 4
        %s257 = scalar_lea.vmem %s0, %s256
        %p258 = pneg %p40
        %p259 = pneg %p37
        %p260 = pneg %p61
        %p261 = pneg %p58
        %p262 = pneg %p82
        %p263 = pneg %p79
        %p264 = pneg %p103
        %p265 = pneg %p100
        %p266 = pneg %p124
        %p267 = pneg %p121
        %p268 = pneg %p145
        %p269 = pneg %p142
        %p270 = pneg %p171
        %p271 = pneg %p168
        %s272 = smul.u32 2, %s19
        %p273 = scmp.lt.s32.totalorder %s272, 3
        %s274 = scalar_select %p273, %s272, 3
        %s275 = smul.addr %s274, 8
        %s276 = scalar_lea.vmem %s6, %s275
        %s277 = smul.u32 2, %s19
        %p278 = scmp.lt.s32.totalorder %s277, 3
        %s279 = scalar_select %p278, %s277, 3
        %s280 = smul.addr %s279, 4
        %s281 = scalar_lea.vmem %s0, %s280
        %s282 = smul.u32 2, %s19
        %s283 = smul.u32 2, %s19
        %p284 = scmp.lt.s32.totalorder %s283, 3
        %s285 = scalar_select %p284, %s283, 3
        %s286 = smul.addr %s285, 8
        %s287 = scalar_lea.vmem %s6, %s286
        %s288 = smul.u32 2, %s19
        %v289 = vld [vmem:[%s281] sm:$0xf]
        %v290 = vld [vmem:[%s281 + $0x4] sm:$0xf]
        %v291 = vld [vmem:[%s1] sm:$0xf]
        %v292 = vld [vmem:[%s1 + $0x4] sm:$0xf]
        %v293 = vld [vmem:[%s1 + $0x8] sm:$0xf]
        %v294 = vld [vmem:[%s1 + $0xc] sm:$0xf]
        %v295 = vld [vmem:[%s1 + $0x10] sm:$0xf]
        %v296 = vld [vmem:[%s1 + $0x14] sm:$0xf]
        %v297 = vld [vmem:[%s1 + $0x18] sm:$0xf]
        %v298 = vld [vmem:[%s1 + $0x1c] sm:$0xf]
        %v299 = vld [vmem:[%s1 + $0x20] sm:$0xf]
        %v300 = vld [vmem:[%s1 + $0x24] sm:$0xf]
        %v301 = vld [vmem:[%s1 + $0x28] sm:$0xf]
        %v302 = vld [vmem:[%s1 + $0x2c] sm:$0xf]
        %v303 = vld [vmem:[%s1 + $0x30] sm:$0xf]
        %v304 = vld [vmem:[%s1 + $0x34] sm:$0xf]
        %v305 = vld [vmem:[%s1 + $0x38] sm:$0xf]
        %v306 = vld [vmem:[%s1 + $0x3c] sm:$0xf]
        %v309 = vunpack.c.l.b16 %v289
        %v310 = vunpack.c.l.b16 %v290
        %v311 = vpack.c.b16 %v310, %v309
        %v329 = vunpack.c.l.b16 %v291
        %v330 = vunpack.c.l.b16 %v292
        %v331 = vunpack.c.l.b16 %v293
        %v332 = vunpack.c.l.b16 %v294
        %v333 = vunpack.c.l.b16 %v295
        %v334 = vunpack.c.l.b16 %v296
        %v335 = vunpack.c.l.b16 %v297
        %v336 = vunpack.c.l.b16 %v298
        %v337 = vunpack.c.l.b16 %v299
        %v338 = vunpack.c.l.b16 %v300
        %v339 = vunpack.c.l.b16 %v301
        %v340 = vunpack.c.l.b16 %v302
        %v341 = vunpack.c.l.b16 %v303
        %v342 = vunpack.c.l.b16 %v304
        %v343 = vunpack.c.l.b16 %v305
        %v344 = vunpack.c.l.b16 %v306
        %v345 = vpack.c.b16 %v330, %v329
        %v346 = vpack.c.b16 %v332, %v331
        %v347 = vpack.c.b16 %v334, %v333
        %v348 = vpack.c.b16 %v336, %v335
        %v349 = vpack.c.b16 %v338, %v337
        %v350 = vpack.c.b16 %v340, %v339
        %v351 = vpack.c.b16 %v342, %v341
        %v352 = vpack.c.b16 %v344, %v343
        %361 = vmatpush.bf16.msra.mxu0 %v352
        %362 = vmatpush.bf16.msra.mxu0 %v351
        %363 = vmatpush.bf16.msra.mxu0 %v350
        %364 = vmatpush.bf16.msra.mxu0 %v349
        %365 = vmatpush.bf16.msra.mxu0 %v348
        %366 = vmatpush.bf16.msra.mxu0 %v347
        %367 = vmatpush.bf16.msra.mxu0 %v346
        %368 = vmatpush.bf16.msra.mxu0 %v345
        %369 = vmatmul.bf16.gmra.mxu0 %v311
        %v370 = vpop.f32.mrf.mxu0
        %v371 = vadd.f32 0.0, %v370
        %v372 = vpop.f32.mrf.mxu0
        %v373 = vadd.f32 0.0, %v372
        %374 = vdwg.mxu0
        %v375 = vld [vmem:[%s4] sm:$0x1]
        %v376 = vpack.c.bf16 %v371, %v371
        %v377 = vpack.c.bf16 %v373, %v373
        %v378 = vpack.c.bf16 %v375, %v375
        %v380 = vpack.i.b16 %v378, %v378
        %v382 = vperm.slane %v380, 0
        %v383 = vunpack.c.l.bf16 %v376
        %v384 = vunpack.c.l.bf16 %v377
        %v385 = vunpack.c.l.bf16 %v382
        %v386 = vadd.f32 %v383, %v385
        %v387 = vadd.f32 %v384, %v385
        %v388 = vpack.c.bf16 %v386, %v386
        %v389 = vpack.c.bf16 %v387, %v387
        %v390 = vunpack.c.l.bf16 %v388
        %v391 = vunpack.c.l.bf16 %v389
        %vm392 = vcmp.gt.f32.partialorder %v390, 0.0
        %vm393 = vcmp.gt.f32.partialorder %v391, 0.0
        %v394 = vmul.f32 %v390, 0.010009766
        %v395 = vmul.f32 %v391, 0.010009766
        %v396 = vpack.c.bf16 %v394, %v394
        %v397 = vpack.c.bf16 %v395, %v395
        %vm398 = vmpackc.low %vm392, %vm392
        %vm399 = vmpackc.low %vm393, %vm393
        %v400 = vsel %vm398, %v388, %v396
        %v401 = vsel %vm399, %v389, %v397
        %v402 = vld [vmem:[#allocation2] sm:$0xf]
        %v403 = vld [vmem:[#allocation2 + $0x4] sm:$0xf]
        %v404 = vld [vmem:[#allocation2 + $0x8] sm:$0xf]
        %v405 = vld [vmem:[#allocation2 + $0xc] sm:$0xf]
        %v406 = vld [vmem:[#allocation2 + $0x10] sm:$0xf]
        %v407 = vld [vmem:[#allocation2 + $0x14] sm:$0xf]
        %v408 = vld [vmem:[#allocation2 + $0x18] sm:$0xf]
        %v409 = vld [vmem:[#allocation2 + $0x1c] sm:$0xf]
        %v410 = vld [vmem:[#allocation2 + $0x20] sm:$0xf]
        %v411 = vld [vmem:[#allocation2 + $0x24] sm:$0xf]
        %v412 = vld [vmem:[#allocation2 + $0x28] sm:$0xf]
        %v413 = vld [vmem:[#allocation2 + $0x2c] sm:$0xf]
        %v414 = vld [vmem:[#allocation2 + $0x30] sm:$0xf]
        %v415 = vld [vmem:[#allocation2 + $0x34] sm:$0xf]
        %v416 = vld [vmem:[#allocation2 + $0x38] sm:$0xf]
        %v417 = vld [vmem:[#allocation2 + $0x3c] sm:$0xf]
        %v420 = vunpack.c.l.b16 %v400
        %v421 = vunpack.c.l.b16 %v401
        %v422 = vpack.c.b16 %v421, %v420
        %v440 = vunpack.c.l.b16 %v402
        %v441 = vunpack.c.l.b16 %v403
        %v442 = vunpack.c.l.b16 %v404
        %v443 = vunpack.c.l.b16 %v405
        %v444 = vunpack.c.l.b16 %v406
        %v445 = vunpack.c.l.b16 %v407
        %v446 = vunpack.c.l.b16 %v408
        %v447 = vunpack.c.l.b16 %v409
        %v448 = vunpack.c.l.b16 %v410
        %v449 = vunpack.c.l.b16 %v411
        %v450 = vunpack.c.l.b16 %v412
        %v451 = vunpack.c.l.b16 %v413
        %v452 = vunpack.c.l.b16 %v414
        %v453 = vunpack.c.l.b16 %v415
        %v454 = vunpack.c.l.b16 %v416
        %v455 = vunpack.c.l.b16 %v417
        %v456 = vpack.c.b16 %v441, %v440
        %v457 = vpack.c.b16 %v443, %v442
        %v458 = vpack.c.b16 %v445, %v444
        %v459 = vpack.c.b16 %v447, %v446
        %v460 = vpack.c.b16 %v449, %v448
        %v461 = vpack.c.b16 %v451, %v450
        %v462 = vpack.c.b16 %v453, %v452
        %v463 = vpack.c.b16 %v455, %v454
        %472 = vmatpush.bf16.msra.mxu0 %v463
        %473 = vmatpush.bf16.msra.mxu0 %v462
        %474 = vmatpush.bf16.msra.mxu0 %v461
        %475 = vmatpush.bf16.msra.mxu0 %v460
        %476 = vmatpush.bf16.msra.mxu0 %v459
        %477 = vmatpush.bf16.msra.mxu0 %v458
        %478 = vmatpush.bf16.msra.mxu0 %v457
        %479 = vmatpush.bf16.msra.mxu0 %v456
        %480 = vmatmul.bf16.gmra.mxu0 %v422
        %v481 = vpop.f32.mrf.mxu0
        %v482 = vadd.f32 0.0, %v481
        %v483 = vpop.f32.mrf.mxu0
        %v484 = vadd.f32 0.0, %v483
        %485 = vdwg.mxu0
        %s486 = scalar_lea.vmem %s4, 1
        %v487 = vld [vmem:[%s486] sm:$0x1]
        %v488 = vpack.c.bf16 %v482, %v482
        %v489 = vpack.c.bf16 %v484, %v484
        %v490 = vpack.c.bf16 %v487, %v487
        %v492 = vpack.i.b16 %v490, %v490
        %v494 = vperm.slane %v492, 0
        %v495 = vunpack.c.l.bf16 %v488
        %v496 = vunpack.c.l.bf16 %v489
        %v497 = vunpack.c.l.bf16 %v494
        %v498 = vadd.f32 %v495, %v497
        %v499 = vadd.f32 %v496, %v497
        %v500 = vpack.c.bf16 %v498, %v498
        %v501 = vpack.c.bf16 %v499, %v499
        %v502 = vunpack.c.l.bf16 %v500
        %v503 = vunpack.c.l.bf16 %v501
        %vm504 = vcmp.gt.f32.partialorder %v502, 0.0
        %vm505 = vcmp.gt.f32.partialorder %v503, 0.0
        %v506 = vmul.f32 %v502, 0.010009766
        %v507 = vmul.f32 %v503, 0.010009766
        %v508 = vpack.c.bf16 %v506, %v506
        %v509 = vpack.c.bf16 %v507, %v507
        %vm510 = vmpackc.low %vm504, %vm504
        %vm511 = vmpackc.low %vm505, %vm505
        %v512 = vsel %vm510, %v500, %v508
        %v513 = vsel %vm511, %v501, %v509
        %s514 = scalar_lea.vmem [#allocation2], 64
        %v515 = vld [vmem:[%s514] sm:$0xf]
        %v516 = vld [vmem:[%s514 + $0x4] sm:$0xf]
        %v517 = vld [vmem:[%s514 + $0x8] sm:$0xf]
        %v518 = vld [vmem:[%s514 + $0xc] sm:$0xf]
        %v519 = vld [vmem:[%s514 + $0x10] sm:$0xf]
        %v520 = vld [vmem:[%s514 + $0x14] sm:$0xf]
        %v521 = vld [vmem:[%s514 + $0x18] sm:$0xf]
        %v522 = vld [vmem:[%s514 + $0x1c] sm:$0xf]
        %v523 = vld [vmem:[%s514 + $0x20] sm:$0xf]
        %v524 = vld [vmem:[%s514 + $0x24] sm:$0xf]
        %v525 = vld [vmem:[%s514 + $0x28] sm:$0xf]
        %v526 = vld [vmem:[%s514 + $0x2c] sm:$0xf]
        %v527 = vld [vmem:[%s514 + $0x30] sm:$0xf]
        %v528 = vld [vmem:[%s514 + $0x34] sm:$0xf]
        %v529 = vld [vmem:[%s514 + $0x38] sm:$0xf]
        %v530 = vld [vmem:[%s514 + $0x3c] sm:$0xf]
        %v533 = vunpack.c.l.b16 %v512
        %v534 = vunpack.c.l.b16 %v513
        %v535 = vpack.c.b16 %v534, %v533
        %v553 = vunpack.c.l.b16 %v515
        %v554 = vunpack.c.l.b16 %v516
        %v555 = vunpack.c.l.b16 %v517
        %v556 = vunpack.c.l.b16 %v518
        %v557 = vunpack.c.l.b16 %v519
        %v558 = vunpack.c.l.b16 %v520
        %v559 = vunpack.c.l.b16 %v521
        %v560 = vunpack.c.l.b16 %v522
        %v561 = vunpack.c.l.b16 %v523
        %v562 = vunpack.c.l.b16 %v524
        %v563 = vunpack.c.l.b16 %v525
        %v564 = vunpack.c.l.b16 %v526
        %v565 = vunpack.c.l.b16 %v527
        %v566 = vunpack.c.l.b16 %v528
        %v567 = vunpack.c.l.b16 %v529
        %v568 = vunpack.c.l.b16 %v530
        %v569 = vpack.c.b16 %v554, %v553
        %v570 = vpack.c.b16 %v556, %v555
        %v571 = vpack.c.b16 %v558, %v557
        %v572 = vpack.c.b16 %v560, %v559
        %v573 = vpack.c.b16 %v562, %v561
        %v574 = vpack.c.b16 %v564, %v563
        %v575 = vpack.c.b16 %v566, %v565
        %v576 = vpack.c.b16 %v568, %v567
        %585 = vmatpush.bf16.msra.mxu0 %v576
        %586 = vmatpush.bf16.msra.mxu0 %v575
        %587 = vmatpush.bf16.msra.mxu0 %v574
        %588 = vmatpush.bf16.msra.mxu0 %v573
        %589 = vmatpush.bf16.msra.mxu0 %v572
        %590 = vmatpush.bf16.msra.mxu0 %v571
        %591 = vmatpush.bf16.msra.mxu0 %v570
        %592 = vmatpush.bf16.msra.mxu0 %v569
        %593 = vmatmul.bf16.gmra.mxu0 %v535
        %v594 = vpop.f32.mrf.mxu0
        %v595 = vadd.f32 0.0, %v594
        %v596 = vpop.f32.mrf.mxu0
        %v597 = vadd.f32 0.0, %v596
        %598 = vdwg.mxu0
        %s599 = scalar_lea.vmem %s4, 2
        %v600 = vld [vmem:[%s599] sm:$0x1]
        %v601 = vpack.c.bf16 %v595, %v595
        %v602 = vpack.c.bf16 %v597, %v597
        %v603 = vpack.c.bf16 %v600, %v600
        %v605 = vpack.i.b16 %v603, %v603
        %v607 = vperm.slane %v605, 0
        %v608 = vunpack.c.l.bf16 %v601
        %v609 = vunpack.c.l.bf16 %v602
        %v610 = vunpack.c.l.bf16 %v607
        %v611 = vadd.f32 %v608, %v610
        %v612 = vadd.f32 %v609, %v610
        %v613 = vpack.c.bf16 %v611, %v611
        %v614 = vpack.c.bf16 %v612, %v612
        %v615 = vunpack.c.l.bf16 %v613
        %v616 = vunpack.c.l.bf16 %v614
        %vm617 = vcmp.gt.f32.partialorder %v615, 0.0
        %vm618 = vcmp.gt.f32.partialorder %v616, 0.0
        %v619 = vmul.f32 %v615, 0.010009766
        %v620 = vmul.f32 %v616, 0.010009766
        %v621 = vpack.c.bf16 %v619, %v619
        %v622 = vpack.c.bf16 %v620, %v620
        %vm623 = vmpackc.low %vm617, %vm617
        %vm624 = vmpackc.low %vm618, %vm618
        %v625 = vsel %vm623, %v613, %v621
        %v626 = vsel %vm624, %v614, %v622
        %v627 = vld [vmem:[#allocation4] sm:$0xf]
        %v628 = vld [vmem:[#allocation4 + $0x4] sm:$0xf]
        %v629 = vld [vmem:[#allocation4 + $0x8] sm:$0xf]
        %v630 = vld [vmem:[#allocation4 + $0xc] sm:$0xf]
        %v631 = vld [vmem:[#allocation4 + $0x10] sm:$0xf]
        %v632 = vld [vmem:[#allocation4 + $0x14] sm:$0xf]
        %v633 = vld [vmem:[#allocation4 + $0x18] sm:$0xf]
        %v634 = vld [vmem:[#allocation4 + $0x1c] sm:$0xf]
        %v635 = vld [vmem:[#allocation4 + $0x20] sm:$0xf]
        %v636 = vld [vmem:[#allocation4 + $0x24] sm:$0xf]
        %v637 = vld [vmem:[#allocation4 + $0x28] sm:$0xf]
        %v638 = vld [vmem:[#allocation4 + $0x2c] sm:$0xf]
        %v639 = vld [vmem:[#allocation4 + $0x30] sm:$0xf]
        %v640 = vld [vmem:[#allocation4 + $0x34] sm:$0xf]
        %v641 = vld [vmem:[#allocation4 + $0x38] sm:$0xf]
        %v642 = vld [vmem:[#allocation4 + $0x3c] sm:$0xf]
        %v643 = vld [vmem:[%s5] sm:$0x1]
        %v645 = vperm.slane %v643, 0
        %v649 = vunpack.c.l.b16 %v625
        %v650 = vunpack.c.l.b16 %v626
        %v651 = vpack.c.b16 %v650, %v649
        %v669 = vunpack.c.l.b16 %v627
        %v670 = vunpack.c.l.b16 %v628
        %v671 = vunpack.c.l.b16 %v629
        %v672 = vunpack.c.l.b16 %v630
        %v673 = vunpack.c.l.b16 %v631
        %v674 = vunpack.c.l.b16 %v632
        %v675 = vunpack.c.l.b16 %v633
        %v676 = vunpack.c.l.b16 %v634
        %v677 = vunpack.c.l.b16 %v635
        %v678 = vunpack.c.l.b16 %v636
        %v679 = vunpack.c.l.b16 %v637
        %v680 = vunpack.c.l.b16 %v638
        %v681 = vunpack.c.l.b16 %v639
        %v682 = vunpack.c.l.b16 %v640
        %v683 = vunpack.c.l.b16 %v641
        %v684 = vunpack.c.l.b16 %v642
        %v685 = vpack.c.b16 %v670, %v669
        %v686 = vpack.c.b16 %v672, %v671
        %v687 = vpack.c.b16 %v674, %v673
        %v688 = vpack.c.b16 %v676, %v675
        %v689 = vpack.c.b16 %v678, %v677
        %v690 = vpack.c.b16 %v680, %v679
        %v691 = vpack.c.b16 %v682, %v681
        %v692 = vpack.c.b16 %v684, %v683
        %701 = vmatpush.bf16.msra.mxu0 %v692
        %702 = vmatpush.bf16.msra.mxu0 %v691
        %703 = vmatpush.bf16.msra.mxu0 %v690
        %704 = vmatpush.bf16.msra.mxu0 %v689
        %705 = vmatpush.bf16.msra.mxu0 %v688
        %706 = vmatpush.bf16.msra.mxu0 %v687
        %707 = vmatpush.bf16.msra.mxu0 %v686
        %708 = vmatpush.bf16.msra.mxu0 %v685
        %709 = vmatmul.bf16.gmra.mxu0 %v651
        %v710 = vpop.f32.mrf.mxu0
        %v711 = vadd.f32 %v645, %v710
        %v712 = vpop.f32.mrf.mxu0
        %v713 = vadd.f32 %v645, %v712
        %714 = vdwg.mxu0
        %715 = vst [vmem:[%s287] sm:$0xff] %v711
        %716 = vst [vmem:[%s287 + $0x8] sm:$0xff] %v713
        %s717 = smul.u32 2, %s19
        %p718 = scmp.lt.s32.totalorder %s717, 3
        %s719 = scalar_select %p718, %s717, 3
        %s720 = smul.addr %s719, 8
        %s721 = scalar_lea.vmem %s6, %s720
        // Predicated region
        $region53: #{old_predictor_forward.1} parent=43 // pred_check
          %p722 = pneg %p168
        $region54: #{old_predictor_forward.1} parent=43 // pred_check_branch
          %724 = sbr.rel (%p722) target = $region56
        $region55: #{old_predictor_forward.1} parent=43 // pred_region
          %s725 = smul.u32 2, %s19
        $region56: #{old_predictor_forward.1} parent=43 // pred_fallthru
          _
      $region44: #{old_predictor_forward.1} parent=5 // pred_fallthru
        _
      %p726 = scmp.le.s32.totalorder 2, %s14
      // Predicated region
      $region57: #{old_predictor_forward.1} parent=5 // pred_check
        %p727 = pneg %p726
      $region58: #{old_predictor_forward.1} parent=5 // pred_check_branch
        %729 = sbr.rel (%p727) target = $region60
      $region59: #{old_predictor_forward.1} parent=5 // pred_region
        %s730 = ssub.s32 %s14, 2
        // Predicated region
        $region61: #{old_predictor_forward.1} parent=59 // pred_check
          %p731 = pneg %p174
        $region62: #{old_predictor_forward.1} parent=59 // pred_check_branch
          %733 = sbr.rel (%p731) target = $region64
        $region63: #{old_predictor_forward.1} parent=59 // pred_region
          %s734 = smul.u32 2, %s20
          %p735 = scmp.lt.s32.totalorder %s734, 3
          %s736 = scalar_select %p735, %s734, 3
          %s737 = smul.addr %s736, 8
          %s738 = scalar_lea.vmem %s6, %s737
        $region64: #{old_predictor_forward.1} parent=59 // pred_fallthru
          _
      $region60: #{old_predictor_forward.1} parent=5 // pred_fallthru
        _
    $region6: #{old_predictor_forward.1} parent=1 // loop_footer
      %s18 = sadd.s32 1, %s14
    $region7: #{old_predictor_forward.1} parent=1 // loop_footer_branch
      %13 = sbr.rel target = $region3
    $region8: #{old_predictor_forward.1} parent=1 // loop_exit
      _
    %739 = vsyncpa [#allocation3], 1
    %s740 = scalar_lea.sflag [#allocation3], 1
    %741 = vsyncpa %s740, 1
    %742 = vsyncpa [#allocation5], 1

</llo_original>
